<compile_context>
chip_gen: v7x
topology: tpu7x:2x2x1
jax: 0.10.0
libtpu: 0.0.40
codegen_flags: <defaults>
</compile_context>

<pallas_src>
import functools

import jax
import jax.numpy as jnp
import numpy as np
from jax.experimental import pallas as pl
from jax.experimental.pallas import tpu as pltpu


# ---------------------------------------------------------------------------
# Fused Pallas kernel (whole UNet + ARF forward for one chunk of the batch)
# ---------------------------------------------------------------------------
def _bevfusion_arf_kernel(x_ref,
                          e1w_ref, b1_ref,
                          rowsel_ref,
                          e2w_ref, b2_ref,
                          d1w_ref, duw_ref, rrep_ref, bd_ref,
                          mtf_ref, mbf_ref, mth_ref, mbh_ref,
                          blksum_ref, rsum_ref, aw1_ref, ab1_ref,
                          aw2_ref, ab2_ref, rbc_ref, blkexp_ref,
                          o_ref, *, c1, nc_img, apply_arf):
    f32 = jnp.float32
    bf16 = jnp.bfloat16

    def band_conv(act, wide_ref, mtop, mbot, bias, extra=None):
        """3x3 conv: one wide banded matmul (all 3 ky bands side by side),
        then XLU rolls + per-image boundary masks for the ky row offsets."""
        t = jnp.dot(act.astype(bf16), wide_ref[...], preferred_element_type=f32)
        if extra is not None:
            t = t + extra                      # decoder: add upsampled-e2 taps
        n = t.shape[0]
        L = t.shape[1] // 3
        t0 = t[:, :L]
        t1 = t[:, L:2 * L]
        t2 = t[:, 2 * L:]
        y = (pltpu.roll(t0, 1, axis=0) * mtop          # ky=0: in[y-1]
             + t1                                       # ky=1: in[y]
             + pltpu.roll(t2, n - 1, axis=0) * mbot     # ky=2: in[y+1]
             + bias)
        return jnp.maximum(y, 0.0)

    x = x_ref[...]                                       # (rows, W*Cin) f32
    mtf = mtf_ref[...]
    mbf = mbf_ref[...]
    mth = mth_ref[...]
    mbh = mbh_ref[...]

    # ---- encoder 1: 3x3 conv + ReLU --------------------------------------
    e1 = band_conv(x, e1w_ref, mtf, mbf, b1_ref[...])    # (rows, W*c1)

    # ---- 2x2 max pool -----------------------------------------------------
    # pair-max over rows and over column groups via rolls (XLU/VPU), then one
    # even-row selection matmul; the even-column selection is folded into e2w.
    nrow = e1.shape[0]
    mrow = jnp.maximum(e1, pltpu.roll(e1, nrow - 1, axis=0))        # rows y,y+1
    ncol = mrow.shape[1]
    mcol = jnp.maximum(mrow, pltpu.roll(mrow, ncol - c1, axis=1))   # cols x,x+1
    p = jnp.dot(rowsel_ref[...], mcol.astype(bf16),
                preferred_element_type=f32)              # (rows/2, W*c1)

    # ---- encoder 2 (bottleneck): 3x3 conv + ReLU --------------------------
    e2 = band_conv(p, e2w_ref, mth, mbh, b2_ref[...])    # (rows/2, Wo*c2)

    # ---- decoder: skip(e1) band + row-repeated upsampled(e2) band ---------
    te2 = jnp.dot(e2.astype(bf16), duw_ref[...], preferred_element_type=f32)
    up = jnp.dot(rrep_ref[...], te2.astype(bf16),
                 preferred_element_type=f32)             # nearest row repeat
    d = band_conv(e1, d1w_ref, mtf, mbf, bd_ref[...], extra=up)  # (rows, W*cout)

    # ---- ARF: SE-style channel attention ----------------------------------
    if apply_arf:
        if nc_img == 1:
            rs = jnp.sum(d, axis=0, keepdims=True)       # (1, W*cout), XLU
        else:
            rs = jnp.dot(blksum_ref[...], d.astype(bf16),
                         preferred_element_type=f32)     # per-image row sums
        gsum = jnp.dot(rs.astype(bf16), rsum_ref[...],
                       preferred_element_type=f32)       # (nimg, cout); 1/(HW)
        z = jnp.maximum(jnp.dot(gsum.astype(bf16), aw1_ref[...],   # folded in aw1
                                preferred_element_type=f32) + ab1_ref[...], 0.0)
        t = jnp.dot(z.astype(bf16), aw2_ref[...],
                    preferred_element_type=f32) + ab2_ref[...]
        att = pl.reciprocal(1.0 + jnp.exp(-t), approx=True)         # sigmoid
        scale = jnp.dot(att.astype(bf16), rbc_ref[...],
                        preferred_element_type=f32)      # (nimg, W*cout)
        if nc_img == 1:
            d = d * scale                                # broadcast over rows
        else:
            d = d * jnp.dot(blkexp_ref[...], scale.astype(bf16),
                            preferred_element_type=f32)
    o_ref[...] = d


# ---------------------------------------------------------------------------
# Host-side operand construction (pure numpy, runs once at build time)
# ---------------------------------------------------------------------------
def _build_operands(params, H, W, nc_img):
    f32 = np.float32
    p = {k: np.asarray(v, dtype=f32) for k, v in params.items()}
    c1 = p["enc1_w"].shape[-1]
    c2 = p["enc2_w"].shape[-1]
    cout = p["dec_w"].shape[-1]
    Ho, Wo = H // 2, W // 2
    NR, NRh = nc_img * H, nc_img * Ho

    def same_col_mask(Wn, kx):
        P = np.zeros((Wn, Wn), f32)
        for xo in range(Wn):
            xi = xo + kx - 1
            if 0 <= xi < Wn:
                P[xi, xo] = 1.0
        return P

    def up_col_mask(Wn, kx):      # half-res source cols -> full-res out cols
        P = np.zeros((Wn // 2, Wn), f32)
        for xo in range(Wn):
            xx = xo + kx - 1
            if 0 <= xx < Wn:
                P[xx // 2, xo] = 1.0
        return P

    def banded_wide(w, col_masks):
        # [B0 | B1 | B2],  B_ky[xi*Cin+ci, x*Cout+co] = mask_kx[xi,x]*w[ky,kx,ci,co]
        return np.concatenate(
            [sum(np.kron(col_masks[kx], w[ky, kx]) for kx in range(3))
             for ky in range(3)], axis=1)

    same_W = [same_col_mask(W, kx) for kx in range(3)]
    same_Wo = [same_col_mask(Wo, kx) for kx in range(3)]
    up_W = [up_col_mask(W, kx) for kx in range(3)]

    e1w = banded_wide(p["enc1_w"], same_W)                  # (W*Cin, 3*W*c1)
    e2w = banded_wide(p["enc2_w"], same_Wo)                 # (Wo*c1, 3*Wo*c2)
    # decoder weight split: concat order in the reference is [upsampled_e2, e1]
    d1w = banded_wide(p["dec_w"][:, :, c2:, :], same_W)     # (W*c1,  3*W*cout)
    duw = banded_wide(p["dec_w"][:, :, :c2, :], up_W)       # (Wo*c2, 3*W*cout)

    # fold the even-column pooling selector into e2w so the kernel feeds the
    # full-width pooled activation straight into the enc2 band matmul.
    cs_e = np.zeros((W, Wo), f32)
    for xo in range(Wo):
        cs_e[2 * xo, xo] = 1.0
    e2w = np.kron(cs_e, np.eye(c1, dtype=f32)) @ e2w        # (W*c1, 3*Wo*c2)

    # even-row pool selector and nearest-up row repeat (block-diag per image)
    rowsel = np.zeros((NRh, NR), f32)
    rrep = np.zeros((NR, NRh), f32)
    for j in range(nc_img):
        for r in range(Ho):
            rowsel[j * Ho + r, j * H + 2 * r] = 1.0
        for y in range(H):
            rrep[j * H + y, j * Ho + y // 2] = 1.0

    # roll boundary masks: zero the first / last row of every image in a chunk
    def boundary_masks(rows_per_img):
        n = nc_img * rows_per_img
        top = np.ones((n, 1), f32)
        bot = np.ones((n, 1), f32)
        top[0::rows_per_img, 0] = 0.0
        bot[rows_per_img - 1::rows_per_img, 0] = 0.0
        return top, bot

    mtf, mbf = boundary_masks(H)
    mth, mbh = boundary_masks(Ho)

    # ARF: per-image row sum / broadcast, lane-group (W) reduce / broadcast
    blksum = np.kron(np.eye(nc_img, dtype=f32), np.ones((1, H), f32))
    blkexp = blksum.T
    rsum = np.kron(np.ones((W, 1), f32), np.eye(cout, dtype=f32))   # (W*cout, cout)
    rbc = rsum.T

    # biases tiled along the packed lane axis; fold 1/(H*W) GAP scale into aw1
    b1 = np.tile(p["enc1_b"], (1, W))
    b2 = np.tile(p["enc2_b"], (1, Wo))
    bd = np.tile(p["dec_b"], (1, W))
    aw1 = p["arf_w1"] / float(H * W)

    as_bf = lambda a: jnp.asarray(a, dtype=jnp.bfloat16)
    as_f32 = lambda a: jnp.asarray(a, dtype=jnp.float32)

    return (as_bf(e1w), as_f32(b1), as_bf(rowsel),
            as_bf(e2w), as_f32(b2),
            as_bf(d1w), as_bf(duw), as_bf(rrep), as_f32(bd),
            as_f32(mtf), as_f32(mbf), as_f32(mth), as_f32(mbh),
            as_bf(blksum), as_bf(rsum), as_bf(aw1), as_f32(p["arf_b1"]),
            as_bf(p["arf_w2"]), as_f32(p["arf_b2"]), as_bf(rbc), as_bf(blkexp))


def _const_spec(a):
    nd = a.ndim
    return pl.BlockSpec(a.shape, lambda g, _nd=nd: (0,) * _nd)


# ---------------------------------------------------------------------------
# Model: parameters + forward builder
# ---------------------------------------------------------------------------
def init_params(key, in_channels, out_channels, c1=8, c2=16, arf_reduction=2):
    ks = jax.random.split(key, 10)

    def conv_w(k, cin, cout):
        return (jax.random.normal(k, (3, 3, cin, cout), jnp.float32)
                * (2.0 / (9 * cin)) ** 0.5)

    ch = max(out_channels // arf_reduction, 1)
    return {
        "enc1_w": conv_w(ks[0], in_channels, c1),
        "enc1_b": 0.1 * jax.random.normal(ks[5], (1, c1), jnp.float32),
        "enc2_w": conv_w(ks[1], c1, c2),
        "enc2_b": 0.1 * jax.random.normal(ks[6], (1, c2), jnp.float32),
        "dec_w": conv_w(ks[2], c2 + c1, out_channels),
        "dec_b": 0.1 * jax.random.normal(ks[7], (1, out_channels), jnp.float32),
        "arf_w1": jax.random.normal(ks[3], (out_channels, ch), jnp.float32)
                  * (2.0 / out_channels) ** 0.5,
        "arf_b1": 0.1 * jax.random.normal(ks[8], (1, ch), jnp.float32),
        "arf_w2": jax.random.normal(ks[4], (ch, out_channels), jnp.float32)
                  * (2.0 / ch) ** 0.5,
        "arf_b2": 0.1 * jax.random.normal(ks[9], (1, out_channels), jnp.float32),
    }


def build_bevfusion_arf(params, N, H, W, in_channels,
                        arf_weight_adjustment=True, use_DA=False):
    """Precomputes banded/selector operands (numpy, once) and returns a jitted
    forward(bev, sem, com, img) -> (N, cout, H, W)."""
    assert H % 2 == 0 and W % 2 == 0, "H, W must be even for the 2x2 pool"
    c1 = int(np.asarray(params["enc1_w"]).shape[-1])
    cout = int(np.asarray(params["dec_w"]).shape[-1])
    assert int(np.asarray(params["enc1_w"]).shape[-2]) == in_channels

    # 2 parallel chunks keep both v7x TensorCores busy; batch is stacked into
    # the matmul M dimension within each chunk (no-op loss on v5e/v6e).
    num_chunks = 2 if (N % 2 == 0 and N >= 2) else 1
    nc_img = N // num_chunks
    rows = nc_img * H
    lanes_in = W * in_channels
    lanes_out = W * cout

    ops = _build_operands(params, H, W, nc_img)

    kernel = functools.partial(_bevfusion_arf_kernel, c1=c1, nc_img=nc_img,
                               apply_arf=arf_weight_adjustment)

    in_specs = [pl.BlockSpec((rows, lanes_in), lambda g: (g, 0))]
    in_specs += [_const_spec(a) for a in ops]

    # explicit VMEM limit only when the constant footprint would exceed the
    # default scoped budget (relevant at real BEV resolutions, not the demo).
    op_bytes = sum(int(np.prod(a.shape)) * a.dtype.itemsize for a in ops)
    io_bytes = rows * (lanes_in + lanes_out) * 4
    vmem_needed = 2 * (op_bytes + io_bytes) + (2 << 20)
    cp_kwargs = dict(dimension_semantics=("parallel",))
    if vmem_needed > (28 << 20):
        cp_kwargs["vmem_limit_bytes"] = int(min(vmem_needed, 120 << 20))

    call = pl.pallas_call(
        kernel,
        out_shape=jax.ShapeDtypeStruct((N * H, lanes_out), jnp.float32),
        grid=(num_chunks,),
        in_specs=in_specs,
        out_specs=pl.BlockSpec((rows, lanes_out), lambda g: (g, 0)),
        compiler_params=pltpu.CompilerParams(**cp_kwargs),
    )

    # TODO(synk): CustonDATransformer (use_DA=True path) has no reference
    # implementation in the source; use_DA defaults to False and is skipped.
    del use_DA

    @jax.jit
    def forward(bev_nchw, sem_nchw, com_nchw, img_nchw=None):
        # single NCHW -> packed (N*H, W*Cin) copy; callers wanting max perf can
        # feed/consume the packed layout directly and skip these transposes.
        x = jnp.concatenate([bev_nchw, sem_nchw, com_nchw], axis=1)
        x = jnp.transpose(x, (0, 2, 3, 1)).astype(jnp.float32)
        x = x.reshape(N * H, W * in_channels)
        out = call(x, *ops)
        out = out.reshape(N, H, W, cout)
        return jnp.transpose(out, (0, 3, 1, 2))          # back to NCHW

    return forward


# ---------------------------------------------------------------------------
# Pure-JAX reference (same synthesized UNet+ARF definition) for a sanity check
# ---------------------------------------------------------------------------
def _reference_forward(params, bev, sem, com):
    to_nhwc = lambda t: jnp.transpose(t, (0, 2, 3, 1)).astype(jnp.float32)
    x = jnp.concatenate([to_nhwc(bev), to_nhwc(sem), to_nhwc(com)], axis=-1)

    def conv3x3_relu(h, w, b):
        Nb, Hh, Ww, Cin = h.shape
        hp = jnp.pad(h, ((0, 0), (1, 1), (1, 1), (0, 0)))
        cols = [hp[:, ky:ky + Hh, kx:kx + Ww, :]
                for ky in range(3) for kx in range(3)]
        patches = jnp.concatenate(cols, axis=-1)
        y = jnp.einsum("nhwk,ko->nhwo", patches,
                       w.reshape(9 * Cin, -1)) + b[0]
        return jnp.maximum(y, 0.0)

    e1 = conv3x3_relu(x, params["enc1_w"], params["enc1_b"])
    p = jnp.maximum(jnp.maximum(e1[:, 0::2, 0::2], e1[:, 0::2, 1::2]),
                    jnp.maximum(e1[:, 1::2, 0::2], e1[:, 1::2, 1::2]))
    e2 = conv3x3_relu(p, params["enc2_w"], params["enc2_b"])
    u = jnp.repeat(jnp.repeat(e2, 2, axis=1), 2, axis=2)
    d = conv3x3_relu(jnp.concatenate([u, e1], axis=-1),
                     params["dec_w"], params["dec_b"])
    gap = jnp.mean(d, axis=(1, 2))
    z = jnp.maximum(gap @ params["arf_w1"] + params["arf_b1"], 0.0)
    att = jax.nn.sigmoid(z @ params["arf_w2"] + params["arf_b2"])
    out = d * att[:, None, None, :]
    return jnp.transpose(out, (0, 3, 1, 2))


# ---------------------------------------------------------------------------
# Demo
# ---------------------------------------------------------------------------
if __name__ == "__main__":
    key = jax.random.PRNGKey(0)
    k_bev, k_sem, k_com, k_img, k_par = jax.random.split(key, 5)

    N, H, W = 2, 16, 16
    c_bev, c_sem, c_com = 4, 4, 4
    in_channels = c_bev + c_sem + c_com      # 12
    out_channels = 8

    bev = jax.random.normal(k_bev, (N, c_bev, H, W), jnp.float32)
    sem = jax.random.normal(k_sem, (N, c_sem, H, W), jnp.float32)
    com = jax.random.normal(k_com, (N, c_com, H, W), jnp.float32)
    img = jax.random.normal(k_img, (N, 8, H, W), jnp.float32)   # unused (use_DA=False)

    params = init_params(k_par, in_channels, out_channels)

    forward = build_bevfusion_arf(params, N, H, W, in_channels)
    out = jax.block_until_ready(forward(bev, sem, com, img))

    assert out.shape == (N, out_channels, H, W), out.shape
    assert bool(jnp.all(jnp.isfinite(out)))

    # sanity check vs. the pure-JAX f32 reference (bf16 MXU tolerance)
    ref = _reference_forward(params, bev, sem, com)
    num = float(jnp.sqrt(jnp.sum((out - ref) ** 2)))
    den = float(jnp.sqrt(jnp.sum(ref ** 2))) + 1e-6
    assert num / den < 0.04, ("relative L2 error too large", num / den)

    print("KERNEL_OK")
</pallas_src>

<mosaic_0001>
module attributes {stable_mosaic.version = 11 : i64} {
  func.func @_bevfusion_arf_kernel(%arg0: i32, %arg1: memref<16x192xf32, #tpu.memory_space<vmem>>, %arg2: memref<192x384xbf16, #tpu.memory_space<vmem>>, %arg3: memref<1x128xf32, #tpu.memory_space<vmem>>, %arg4: memref<8x16xbf16, #tpu.memory_space<vmem>>, %arg5: memref<128x384xbf16, #tpu.memory_space<vmem>>, %arg6: memref<1x128xf32, #tpu.memory_space<vmem>>, %arg7: memref<128x384xbf16, #tpu.memory_space<vmem>>, %arg8: memref<128x384xbf16, #tpu.memory_space<vmem>>, %arg9: memref<16x8xbf16, #tpu.memory_space<vmem>>, %arg10: memref<1x128xf32, #tpu.memory_space<vmem>>, %arg11: memref<16x1xf32, #tpu.memory_space<vmem>>, %arg12: memref<16x1xf32, #tpu.memory_space<vmem>>, %arg13: memref<8x1xf32, #tpu.memory_space<vmem>>, %arg14: memref<8x1xf32, #tpu.memory_space<vmem>>, %arg15: memref<1x16xbf16, #tpu.memory_space<vmem>>, %arg16: memref<128x8xbf16, #tpu.memory_space<vmem>>, %arg17: memref<8x4xbf16, #tpu.memory_space<vmem>>, %arg18: memref<1x4xf32, #tpu.memory_space<vmem>>, %arg19: memref<4x8xbf16, #tpu.memory_space<vmem>>, %arg20: memref<1x8xf32, #tpu.memory_space<vmem>>, %arg21: memref<8x128xbf16, #tpu.memory_space<vmem>>, %arg22: memref<16x1xbf16, #tpu.memory_space<vmem>>, %arg23: memref<16x128xf32, #tpu.memory_space<vmem>>) attributes {dimension_semantics = [#tpu.dimension_semantics<parallel>], iteration_bounds = array<i64: 2>, scalar_prefetch = 0 : i64, scratch_operands = 0 : i64, tpu.core_type = #tpu.core_type<tc>, window_params = [{transform_indices = @transform_0, window_bounds = array<i64: 16, 192>}, {pipeline_mode = #tpu.pipeline_mode<synchronous>, transform_indices = @transform_1, window_bounds = array<i64: 192, 384>}, {pipeline_mode = #tpu.pipeline_mode<synchronous>, transform_indices = @transform_2, window_bounds = array<i64: 1, 128>}, {pipeline_mode = #tpu.pipeline_mode<synchronous>, transform_indices = @transform_3, window_bounds = array<i64: 8, 16>}, {pipeline_mode = #tpu.pipeline_mode<synchronous>, transform_indices = @transform_4, window_bounds = array<i64: 128, 384>}, {pipeline_mode = #tpu.pipeline_mode<synchronous>, transform_indices = @transform_5, window_bounds = array<i64: 1, 128>}, {pipeline_mode = #tpu.pipeline_mode<synchronous>, transform_indices = @transform_6, window_bounds = array<i64: 128, 384>}, {pipeline_mode = #tpu.pipeline_mode<synchronous>, transform_indices = @transform_7, window_bounds = array<i64: 128, 384>}, {pipeline_mode = #tpu.pipeline_mode<synchronous>, transform_indices = @transform_8, window_bounds = array<i64: 16, 8>}, {pipeline_mode = #tpu.pipeline_mode<synchronous>, transform_indices = @transform_9, window_bounds = array<i64: 1, 128>}, {pipeline_mode = #tpu.pipeline_mode<synchronous>, transform_indices = @transform_10, window_bounds = array<i64: 16, 1>}, {pipeline_mode = #tpu.pipeline_mode<synchronous>, transform_indices = @transform_11, window_bounds = array<i64: 16, 1>}, {pipeline_mode = #tpu.pipeline_mode<synchronous>, transform_indices = @transform_12, window_bounds = array<i64: 8, 1>}, {pipeline_mode = #tpu.pipeline_mode<synchronous>, transform_indices = @transform_13, window_bounds = array<i64: 8, 1>}, {pipeline_mode = #tpu.pipeline_mode<synchronous>, transform_indices = @transform_14, window_bounds = array<i64: 1, 16>}, {pipeline_mode = #tpu.pipeline_mode<synchronous>, transform_indices = @transform_15, window_bounds = array<i64: 128, 8>}, {pipeline_mode = #tpu.pipeline_mode<synchronous>, transform_indices = @transform_16, window_bounds = array<i64: 8, 4>}, {pipeline_mode = #tpu.pipeline_mode<synchronous>, transform_indices = @transform_17, window_bounds = array<i64: 1, 4>}, {pipeline_mode = #tpu.pipeline_mode<synchronous>, transform_indices = @transform_18, window_bounds = array<i64: 4, 8>}, {pipeline_mode = #tpu.pipeline_mode<synchronous>, transform_indices = @transform_19, window_bounds = array<i64: 1, 8>}, {pipeline_mode = #tpu.pipeline_mode<synchronous>, transform_indices = @transform_20, window_bounds = array<i64: 8, 128>}, {pipeline_mode = #tpu.pipeline_mode<synchronous>, transform_indices = @transform_21, window_bounds = array<i64: 16, 1>}, {transform_indices = @transform_22, window_bounds = array<i64: 16, 128>}]} {
    %c0 = arith.constant 0 : index
    %c0_0 = arith.constant 0 : index
    %0 = vector.load %arg1[%c0, %c0_0] : memref<16x192xf32, #tpu.memory_space<vmem>>, vector<16x192xf32>
    %c0_1 = arith.constant 0 : index
    %c0_2 = arith.constant 0 : index
    %1 = vector.load %arg11[%c0_1, %c0_2] : memref<16x1xf32, #tpu.memory_space<vmem>>, vector<16x1xf32>
    %c0_3 = arith.constant 0 : index
    %c0_4 = arith.constant 0 : index
    %2 = vector.load %arg12[%c0_3, %c0_4] : memref<16x1xf32, #tpu.memory_space<vmem>>, vector<16x1xf32>
    %c0_5 = arith.constant 0 : index
    %c0_6 = arith.constant 0 : index
    %3 = vector.load %arg13[%c0_5, %c0_6] : memref<8x1xf32, #tpu.memory_space<vmem>>, vector<8x1xf32>
    %c0_7 = arith.constant 0 : index
    %c0_8 = arith.constant 0 : index
    %4 = vector.load %arg14[%c0_7, %c0_8] : memref<8x1xf32, #tpu.memory_space<vmem>>, vector<8x1xf32>
    %c0_9 = arith.constant 0 : index
    %c0_10 = arith.constant 0 : index
    %5 = vector.load %arg3[%c0_9, %c0_10] : memref<1x128xf32, #tpu.memory_space<vmem>>, vector<1x128xf32>
    %6 = arith.truncf %0 : vector<16x192xf32> to vector<16x192xbf16>
    %c0_11 = arith.constant 0 : index
    %c0_12 = arith.constant 0 : index
    %7 = vector.load %arg2[%c0_11, %c0_12] : memref<192x384xbf16, #tpu.memory_space<vmem>>, vector<192x384xbf16>
    %cst = arith.constant dense<0.000000e+00> : vector<16x384xf32>
    %8 = tpu.matmul %6, %7, %cst {dimension_numbers = #tpu.dot_dimension_numbers<[1], [0], [0], [1], [0, 0, 1, 1], [], []>} : vector<16x192xbf16>, vector<192x384xbf16>, vector<16x384xf32> -> vector<16x384xf32>
    %9 = vector.extract_strided_slice %8 {offsets = [0, 0], sizes = [16, 128], strides = [1, 1]} : vector<16x384xf32> to vector<16x128xf32>
    %10 = vector.extract_strided_slice %8 {offsets = [0, 128], sizes = [16, 128], strides = [1, 1]} : vector<16x384xf32> to vector<16x128xf32>
    %11 = vector.extract_strided_slice %8 {offsets = [0, 256], sizes = [16, 128], strides = [1, 1]} : vector<16x384xf32> to vector<16x128xf32>
    %c1_i32 = arith.constant 1 : i32
    %12 = tpu.dynamic_rotate %9 by %c1_i32 dim 0 : vector<16x128xf32>, i32 -> vector<16x128xf32>
    %13 = vector.broadcast %1 : vector<16x1xf32> to vector<16x128xf32>
    %14 = arith.mulf %12, %13 : vector<16x128xf32>
    %15 = arith.addf %14, %10 : vector<16x128xf32>
    %c15_i32 = arith.constant 15 : i32
    %16 = tpu.dynamic_rotate %11 by %c15_i32 dim 0 : vector<16x128xf32>, i32 -> vector<16x128xf32>
    %17 = vector.broadcast %2 : vector<16x1xf32> to vector<16x128xf32>
    %18 = arith.mulf %16, %17 : vector<16x128xf32>
    %19 = arith.addf %15, %18 : vector<16x128xf32>
    %20 = vector.broadcast %5 : vector<1x128xf32> to vector<16x128xf32>
    %21 = arith.addf %19, %20 : vector<16x128xf32>
    %cst_13 = arith.constant 0.000000e+00 : f32
    %22 = vector.broadcast %cst_13 : f32 to vector<16x128xf32>
    %23 = arith.maximumf %21, %22 : vector<16x128xf32>
    %c15_i32_14 = arith.constant 15 : i32
    %24 = tpu.dynamic_rotate %23 by %c15_i32_14 dim 0 : vector<16x128xf32>, i32 -> vector<16x128xf32>
    %25 = arith.maximumf %23, %24 : vector<16x128xf32>
    %c120_i32 = arith.constant 120 : i32
    %26 = tpu.dynamic_rotate %25 by %c120_i32 dim 1 : vector<16x128xf32>, i32 -> vector<16x128xf32>
    %27 = arith.maximumf %25, %26 : vector<16x128xf32>
    %c0_15 = arith.constant 0 : index
    %c0_16 = arith.constant 0 : index
    %28 = vector.load %arg4[%c0_15, %c0_16] : memref<8x16xbf16, #tpu.memory_space<vmem>>, vector<8x16xbf16>
    %29 = arith.truncf %27 : vector<16x128xf32> to vector<16x128xbf16>
    %cst_17 = arith.constant dense<0.000000e+00> : vector<8x128xf32>
    %30 = tpu.matmul %28, %29, %cst_17 {dimension_numbers = #tpu.dot_dimension_numbers<[1], [0], [0], [1], [0, 0, 1, 1], [], []>} : vector<8x16xbf16>, vector<16x128xbf16>, vector<8x128xf32> -> vector<8x128xf32>
    %c0_18 = arith.constant 0 : index
    %c0_19 = arith.constant 0 : index
    %31 = vector.load %arg6[%c0_18, %c0_19] : memref<1x128xf32, #tpu.memory_space<vmem>>, vector<1x128xf32>
    %32 = arith.truncf %30 : vector<8x128xf32> to vector<8x128xbf16>
    %c0_20 = arith.constant 0 : index
    %c0_21 = arith.constant 0 : index
    %33 = vector.load %arg5[%c0_20, %c0_21] : memref<128x384xbf16, #tpu.memory_space<vmem>>, vector<128x384xbf16>
    %cst_22 = arith.constant dense<0.000000e+00> : vector<8x384xf32>
    %34 = tpu.matmul %32, %33, %cst_22 {dimension_numbers = #tpu.dot_dimension_numbers<[1], [0], [0], [1], [0, 0, 1, 1], [], []>} : vector<8x128xbf16>, vector<128x384xbf16>, vector<8x384xf32> -> vector<8x384xf32>
    %35 = vector.extract_strided_slice %34 {offsets = [0, 0], sizes = [8, 128], strides = [1, 1]} : vector<8x384xf32> to vector<8x128xf32>
    %36 = vector.extract_strided_slice %34 {offsets = [0, 128], sizes = [8, 128], strides = [1, 1]} : vector<8x384xf32> to vector<8x128xf32>
    %37 = vector.extract_strided_slice %34 {offsets = [0, 256], sizes = [8, 128], strides = [1, 1]} : vector<8x384xf32> to vector<8x128xf32>
    %c1_i32_23 = arith.constant 1 : i32
    %38 = tpu.dynamic_rotate %35 by %c1_i32_23 dim 0 : vector<8x128xf32>, i32 -> vector<8x128xf32>
    %39 = vector.broadcast %3 : vector<8x1xf32> to vector<8x128xf32>
    %40 = arith.mulf %38, %39 : vector<8x128xf32>
    %41 = arith.addf %40, %36 : vector<8x128xf32>
    %c7_i32 = arith.constant 7 : i32
    %42 = tpu.dynamic_rotate %37 by %c7_i32 dim 0 : vector<8x128xf32>, i32 -> vector<8x128xf32>
    %43 = vector.broadcast %4 : vector<8x1xf32> to vector<8x128xf32>
    %44 = arith.mulf %42, %43 : vector<8x128xf32>
    %45 = arith.addf %41, %44 : vector<8x128xf32>
    %46 = vector.broadcast %31 : vector<1x128xf32> to vector<8x128xf32>
    %47 = arith.addf %45, %46 : vector<8x128xf32>
    %cst_24 = arith.constant 0.000000e+00 : f32
    %48 = vector.broadcast %cst_24 : f32 to vector<8x128xf32>
    %49 = arith.maximumf %47, %48 : vector<8x128xf32>
    %50 = arith.truncf %49 : vector<8x128xf32> to vector<8x128xbf16>
    %c0_25 = arith.constant 0 : index
    %c0_26 = arith.constant 0 : index
    %51 = vector.load %arg8[%c0_25, %c0_26] : memref<128x384xbf16, #tpu.memory_space<vmem>>, vector<128x384xbf16>
    %cst_27 = arith.constant dense<0.000000e+00> : vector<8x384xf32>
    %52 = tpu.matmul %50, %51, %cst_27 {dimension_numbers = #tpu.dot_dimension_numbers<[1], [0], [0], [1], [0, 0, 1, 1], [], []>} : vector<8x128xbf16>, vector<128x384xbf16>, vector<8x384xf32> -> vector<8x384xf32>
    %c0_28 = arith.constant 0 : index
    %c0_29 = arith.constant 0 : index
    %53 = vector.load %arg9[%c0_28, %c0_29] : memref<16x8xbf16, #tpu.memory_space<vmem>>, vector<16x8xbf16>
    %54 = arith.truncf %52 : vector<8x384xf32> to vector<8x384xbf16>
    %cst_30 = arith.constant dense<0.000000e+00> : vector<16x384xf32>
    %55 = tpu.matmul %53, %54, %cst_30 {dimension_numbers = #tpu.dot_dimension_numbers<[1], [0], [0], [1], [0, 0, 1, 1], [], []>} : vector<16x8xbf16>, vector<8x384xbf16>, vector<16x384xf32> -> vector<16x384xf32>
    %c0_31 = arith.constant 0 : index
    %c0_32 = arith.constant 0 : index
    %56 = vector.load %arg10[%c0_31, %c0_32] : memref<1x128xf32, #tpu.memory_space<vmem>>, vector<1x128xf32>
    %57 = arith.truncf %23 : vector<16x128xf32> to vector<16x128xbf16>
    %c0_33 = arith.constant 0 : index
    %c0_34 = arith.constant 0 : index
    %58 = vector.load %arg7[%c0_33, %c0_34] : memref<128x384xbf16, #tpu.memory_space<vmem>>, vector<128x384xbf16>
    %cst_35 = arith.constant dense<0.000000e+00> : vector<16x384xf32>
    %59 = tpu.matmul %57, %58, %cst_35 {dimension_numbers = #tpu.dot_dimension_numbers<[1], [0], [0], [1], [0, 0, 1, 1], [], []>} : vector<16x128xbf16>, vector<128x384xbf16>, vector<16x384xf32> -> vector<16x384xf32>
    %60 = arith.addf %59, %55 : vector<16x384xf32>
    %61 = vector.extract_strided_slice %60 {offsets = [0, 0], sizes = [16, 128], strides = [1, 1]} : vector<16x384xf32> to vector<16x128xf32>
    %62 = vector.extract_strided_slice %60 {offsets = [0, 128], sizes = [16, 128], strides = [1, 1]} : vector<16x384xf32> to vector<16x128xf32>
    %63 = vector.extract_strided_slice %60 {offsets = [0, 256], sizes = [16, 128], strides = [1, 1]} : vector<16x384xf32> to vector<16x128xf32>
    %c1_i32_36 = arith.constant 1 : i32
    %64 = tpu.dynamic_rotate %61 by %c1_i32_36 dim 0 : vector<16x128xf32>, i32 -> vector<16x128xf32>
    %65 = vector.broadcast %1 : vector<16x1xf32> to vector<16x128xf32>
    %66 = arith.mulf %64, %65 : vector<16x128xf32>
    %67 = arith.addf %66, %62 : vector<16x128xf32>
    %c15_i32_37 = arith.constant 15 : i32
    %68 = tpu.dynamic_rotate %63 by %c15_i32_37 dim 0 : vector<16x128xf32>, i32 -> vector<16x128xf32>
    %69 = vector.broadcast %2 : vector<16x1xf32> to vector<16x128xf32>
    %70 = arith.mulf %68, %69 : vector<16x128xf32>
    %71 = arith.addf %67, %70 : vector<16x128xf32>
    %72 = vector.broadcast %56 : vector<1x128xf32> to vector<16x128xf32>
    %73 = arith.addf %71, %72 : vector<16x128xf32>
    %cst_38 = arith.constant 0.000000e+00 : f32
    %74 = vector.broadcast %cst_38 : f32 to vector<16x128xf32>
    %75 = arith.maximumf %73, %74 : vector<16x128xf32>
    %cst_39 = arith.constant dense<0.000000e+00> : vector<128xf32>
    %76 = vector.multi_reduction <add>, %75, %cst_39 [0] : vector<16x128xf32> to vector<128xf32>
    %77 = vector.shape_cast %76 : vector<128xf32> to vector<1x128xf32>
    %78 = arith.truncf %77 : vector<1x128xf32> to vector<1x128xbf16>
    %c0_40 = arith.constant 0 : index
    %c0_41 = arith.constant 0 : index
    %79 = vector.load %arg16[%c0_40, %c0_41] : memref<128x8xbf16, #tpu.memory_space<vmem>>, vector<128x8xbf16>
    %cst_42 = arith.constant dense<0.000000e+00> : vector<1x8xf32>
    %80 = tpu.matmul %78, %79, %cst_42 {dimension_numbers = #tpu.dot_dimension_numbers<[1], [0], [0], [1], [0, 0, 1, 1], [], []>} : vector<1x128xbf16>, vector<128x8xbf16>, vector<1x8xf32> -> vector<1x8xf32>
    %81 = arith.truncf %80 : vector<1x8xf32> to vector<1x8xbf16>
    %c0_43 = arith.constant 0 : index
    %c0_44 = arith.constant 0 : index
    %82 = vector.load %arg17[%c0_43, %c0_44] : memref<8x4xbf16, #tpu.memory_space<vmem>>, vector<8x4xbf16>
    %cst_45 = arith.constant dense<0.000000e+00> : vector<1x4xf32>
    %83 = tpu.matmul %81, %82, %cst_45 {dimension_numbers = #tpu.dot_dimension_numbers<[1], [0], [0], [1], [0, 0, 1, 1], [], []>} : vector<1x8xbf16>, vector<8x4xbf16>, vector<1x4xf32> -> vector<1x4xf32>
    %c0_46 = arith.constant 0 : index
    %c0_47 = arith.constant 0 : index
    %84 = vector.load %arg18[%c0_46, %c0_47] : memref<1x4xf32, #tpu.memory_space<vmem>>, vector<1x4xf32>
    %85 = arith.addf %83, %84 : vector<1x4xf32>
    %cst_48 = arith.constant 0.000000e+00 : f32
    %86 = vector.broadcast %cst_48 : f32 to vector<1x4xf32>
    %87 = arith.maximumf %85, %86 : vector<1x4xf32>
    %88 = arith.truncf %87 : vector<1x4xf32> to vector<1x4xbf16>
    %c0_49 = arith.constant 0 : index
    %c0_50 = arith.constant 0 : index
    %89 = vector.load %arg19[%c0_49, %c0_50] : memref<4x8xbf16, #tpu.memory_space<vmem>>, vector<4x8xbf16>
    %cst_51 = arith.constant dense<0.000000e+00> : vector<1x8xf32>
    %90 = tpu.matmul %88, %89, %cst_51 {dimension_numbers = #tpu.dot_dimension_numbers<[1], [0], [0], [1], [0, 0, 1, 1], [], []>} : vector<1x4xbf16>, vector<4x8xbf16>, vector<1x8xf32> -> vector<1x8xf32>
    %c0_52 = arith.constant 0 : index
    %c0_53 = arith.constant 0 : index
    %91 = vector.load %arg20[%c0_52, %c0_53] : memref<1x8xf32, #tpu.memory_space<vmem>>, vector<1x8xf32>
    %92 = arith.addf %90, %91 : vector<1x8xf32>
    %cst_54 = arith.constant 0.000000e+00 : f32
    %93 = vector.broadcast %cst_54 : f32 to vector<1x8xf32>
    %94 = arith.subf %93, %92 : vector<1x8xf32>
    %95 = math.exp %94 : vector<1x8xf32>
    %cst_55 = arith.constant 1.000000e+00 : f32
    %96 = vector.broadcast %cst_55 : f32 to vector<1x8xf32>
    %97 = arith.addf %96, %95 : vector<1x8xf32>
    %98 = tpu.reciprocal %97 {approx = true} : vector<1x8xf32> -> vector<1x8xf32>
    %99 = arith.truncf %98 : vector<1x8xf32> to vector<1x8xbf16>
    %c0_56 = arith.constant 0 : index
    %c0_57 = arith.constant 0 : index
    %100 = vector.load %arg21[%c0_56, %c0_57] : memref<8x128xbf16, #tpu.memory_space<vmem>>, vector<8x128xbf16>
    %cst_58 = arith.constant dense<0.000000e+00> : vector<1x128xf32>
    %101 = tpu.matmul %99, %100, %cst_58 {dimension_numbers = #tpu.dot_dimension_numbers<[1], [0], [0], [1], [0, 0, 1, 1], [], []>} : vector<1x8xbf16>, vector<8x128xbf16>, vector<1x128xf32> -> vector<1x128xf32>
    %102 = vector.broadcast %101 : vector<1x128xf32> to vector<16x128xf32>
    %103 = arith.mulf %75, %102 : vector<16x128xf32>
    %c0_59 = arith.constant 0 : index
    %c0_60 = arith.constant 0 : index
    %104 = vector.load %arg23[%c0_59, %c0_60] : memref<16x128xf32, #tpu.memory_space<vmem>>, vector<16x128xf32>
    tpu.vector_store %arg23[%c0_59, %c0_60], %103 {strides = array<i32>} : memref<16x128xf32, #tpu.memory_space<vmem>>, vector<16x128xf32>,
    return
  }
  func.func @transform_0(%arg0: i32) -> (i32, i32) {
    %c0_i32 = arith.constant 0 : i32
    %c0_i32_0 = arith.constant 0 : i32
    return %arg0, %c0_i32 : i32, i32
  }
  func.func @transform_1(%arg0: i32) -> (i32, i32) {
    %c0_i32 = arith.constant 0 : i32
    %c0_i32_0 = arith.constant 0 : i32
    %c0_i32_1 = arith.constant 0 : i32
    return %c0_i32, %c0_i32_0 : i32, i32
  }
  func.func @transform_2(%arg0: i32) -> (i32, i32) {
    %c0_i32 = arith.constant 0 : i32
    %c0_i32_0 = arith.constant 0 : i32
    %c0_i32_1 = arith.constant 0 : i32
    return %c0_i32, %c0_i32_0 : i32, i32
  }
  func.func @transform_3(%arg0: i32) -> (i32, i32) {
    %c0_i32 = arith.constant 0 : i32
    %c0_i32_0 = arith.constant 0 : i32
    %c0_i32_1 = arith.constant 0 : i32
    return %c0_i32, %c0_i32_0 : i32, i32
  }
  func.func @transform_4(%arg0: i32) -> (i32, i32) {
    %c0_i32 = arith.constant 0 : i32
    %c0_i32_0 = arith.constant 0 : i32
    %c0_i32_1 = arith.constant 0 : i32
    return %c0_i32, %c0_i32_0 : i32, i32
  }
  func.func @transform_5(%arg0: i32) -> (i32, i32) {
    %c0_i32 = arith.constant 0 : i32
    %c0_i32_0 = arith.constant 0 : i32
    %c0_i32_1 = arith.constant 0 : i32
    return %c0_i32, %c0_i32_0 : i32, i32
  }
  func.func @transform_6(%arg0: i32) -> (i32, i32) {
    %c0_i32 = arith.constant 0 : i32
    %c0_i32_0 = arith.constant 0 : i32
    %c0_i32_1 = arith.constant 0 : i32
    return %c0_i32, %c0_i32_0 : i32, i32
  }
  func.func @transform_7(%arg0: i32) -> (i32, i32) {
    %c0_i32 = arith.constant 0 : i32
    %c0_i32_0 = arith.constant 0 : i32
    %c0_i32_1 = arith.constant 0 : i32
    return %c0_i32, %c0_i32_0 : i32, i32
  }
  func.func @transform_8(%arg0: i32) -> (i32, i32) {
    %c0_i32 = arith.constant 0 : i32
    %c0_i32_0 = arith.constant 0 : i32
    %c0_i32_1 = arith.constant 0 : i32
    return %c0_i32, %c0_i32_0 : i32, i32
  }
  func.func @transform_9(%arg0: i32) -> (i32, i32) {
    %c0_i32 = arith.constant 0 : i32
    %c0_i32_0 = arith.constant 0 : i32
    %c0_i32_1 = arith.constant 0 : i32
    return %c0_i32, %c0_i32_0 : i32, i32
  }
  func.func @transform_10(%arg0: i32) -> (i32, i32) {
    %c0_i32 = arith.constant 0 : i32
    %c0_i32_0 = arith.constant 0 : i32
    %c0_i32_1 = arith.constant 0 : i32
    return %c0_i32, %c0_i32_0 : i32, i32
  }
  func.func @transform_11(%arg0: i32) -> (i32, i32) {
    %c0_i32 = arith.constant 0 : i32
    %c0_i32_0 = arith.constant 0 : i32
    %c0_i32_1 = arith.constant 0 : i32
    return %c0_i32, %c0_i32_0 : i32, i32
  }
  func.func @transform_12(%arg0: i32) -> (i32, i32) {
    %c0_i32 = arith.constant 0 : i32
    %c0_i32_0 = arith.constant 0 : i32
    %c0_i32_1 = arith.constant 0 : i32
    return %c0_i32, %c0_i32_0 : i32, i32
  }
  func.func @transform_13(%arg0: i32) -> (i32, i32) {
    %c0_i32 = arith.constant 0 : i32
    %c0_i32_0 = arith.constant 0 : i32
    %c0_i32_1 = arith.constant 0 : i32
    return %c0_i32, %c0_i32_0 : i32, i32
  }
  func.func @transform_14(%arg0: i32) -> (i32, i32) {
    %c0_i32 = arith.constant 0 : i32
    %c0_i32_0 = arith.constant 0 : i32
    %c0_i32_1 = arith.constant 0 : i32
    return %c0_i32, %c0_i32_0 : i32, i32
  }
  func.func @transform_15(%arg0: i32) -> (i32, i32) {
    %c0_i32 = arith.constant 0 : i32
    %c0_i32_0 = arith.constant 0 : i32
    %c0_i32_1 = arith.constant 0 : i32
    return %c0_i32, %c0_i32_0 : i32, i32
  }
  func.func @transform_16(%arg0: i32) -> (i32, i32) {
    %c0_i32 = arith.constant 0 : i32
    %c0_i32_0 = arith.constant 0 : i32
    %c0_i32_1 = arith.constant 0 : i32
    return %c0_i32, %c0_i32_0 : i32, i32
  }
  func.func @transform_17(%arg0: i32) -> (i32, i32) {
    %c0_i32 = arith.constant 0 : i32
    %c0_i32_0 = arith.constant 0 : i32
    %c0_i32_1 = arith.constant 0 : i32
    return %c0_i32, %c0_i32_0 : i32, i32
  }
  func.func @transform_18(%arg0: i32) -> (i32, i32) {
    %c0_i32 = arith.constant 0 : i32
    %c0_i32_0 = arith.constant 0 : i32
    %c0_i32_1 = arith.constant 0 : i32
    return %c0_i32, %c0_i32_0 : i32, i32
  }
  func.func @transform_19(%arg0: i32) -> (i32, i32) {
    %c0_i32 = arith.constant 0 : i32
    %c0_i32_0 = arith.constant 0 : i32
    %c0_i32_1 = arith.constant 0 : i32
    return %c0_i32, %c0_i32_0 : i32, i32
  }
  func.func @transform_20(%arg0: i32) -> (i32, i32) {
    %c0_i32 = arith.constant 0 : i32
    %c0_i32_0 = arith.constant 0 : i32
    %c0_i32_1 = arith.constant 0 : i32
    return %c0_i32, %c0_i32_0 : i32, i32
  }
  func.func @transform_21(%arg0: i32) -> (i32, i32) {
    %c0_i32 = arith.constant 0 : i32
    %c0_i32_0 = arith.constant 0 : i32
    %c0_i32_1 = arith.constant 0 : i32
    return %c0_i32, %c0_i32_0 : i32, i32
  }
  func.func @transform_22(%arg0: i32) -> (i32, i32) {
    %c0_i32 = arith.constant 0 : i32
    %c0_i32_0 = arith.constant 0 : i32
    return %arg0, %c0_i32 : i32, i32
  }
}

</mosaic_0001>

<llo_original>
// kernel: forward.1
$region0: #{forward.1}
  #allocation0 [shape = 'u32[]', space=smem, size = 0x4, offset = 0x4, fixed_abs, tag = 'smem constant byte address 0x4 - core index']
  #allocation1 [shape = 'u32[144,128]{1,0:T(1,128)}', space=vmem, size = 0x12000, scoped, tag = 'internal scratch']
  %s0 = inlined_call_operand.vmem [shape: f32[32,192], index: 0, kind: input, shape index: {}]
  %s1 = inlined_call_operand.vmem [shape: bf16[192,384], index: 1, kind: input, shape index: {}]
  %s2 = inlined_call_operand.vmem [shape: f32[1,128], index: 2, kind: input, shape index: {}]
  %s3 = inlined_call_operand.vmem [shape: bf16[8,16], index: 3, kind: input, shape index: {}]
  %s4 = inlined_call_operand.vmem [shape: bf16[128,384], index: 4, kind: input, shape index: {}]
  %s5 = inlined_call_operand.vmem [shape: f32[1,128], index: 5, kind: input, shape index: {}]
  %s6 = inlined_call_operand.vmem [shape: bf16[128,384], index: 6, kind: input, shape index: {}]
  %s7 = inlined_call_operand.vmem [shape: bf16[128,384], index: 7, kind: input, shape index: {}]
  %s8 = inlined_call_operand.vmem [shape: bf16[16,8], index: 8, kind: input, shape index: {}]
  %s9 = inlined_call_operand.vmem [shape: f32[1,128], index: 9, kind: input, shape index: {}]
  %s10 = inlined_call_operand.vmem [shape: f32[16,1], index: 10, kind: input, shape index: {}]
  %s11 = inlined_call_operand.vmem [shape: f32[16,1], index: 11, kind: input, shape index: {}]
  %s12 = inlined_call_operand.vmem [shape: f32[8,1], index: 12, kind: input, shape index: {}]
  %s13 = inlined_call_operand.vmem [shape: f32[8,1], index: 13, kind: input, shape index: {}]
  %s14 = inlined_call_operand.vmem [shape: bf16[1,16], index: 14, kind: input, shape index: {}]
  %s15 = inlined_call_operand.vmem [shape: bf16[128,8], index: 15, kind: input, shape index: {}]
  %s16 = inlined_call_operand.vmem [shape: bf16[8,4], index: 16, kind: input, shape index: {}]
  %s17 = inlined_call_operand.vmem [shape: f32[1,4], index: 17, kind: input, shape index: {}]
  %s18 = inlined_call_operand.vmem [shape: bf16[4,8], index: 18, kind: input, shape index: {}]
  %s19 = inlined_call_operand.vmem [shape: f32[1,8], index: 19, kind: input, shape index: {}]
  %s20 = inlined_call_operand.vmem [shape: bf16[8,128], index: 20, kind: input, shape index: {}]
  %s21 = inlined_call_operand.vmem [shape: bf16[16,1], index: 21, kind: input, shape index: {}]
  %s22 = inlined_call_operand.vmem [shape: f32[32,128], index: 22, kind: output, shape index: {}]
  %s23 = sld [smem:[#allocation0]]
  $region121: #{forward.1} parent=0
    _
  %s25 = ssub.s32 1, %s23
  %s26 = scalar_select 0, %s25, %s23
  loop: start=0, step=1, limit=4
  $region2: #{forward.1} parent=0 // loop_pre_header
    _
  $region3: #{forward.1} parent=0 // loop_header
    %s28 = sphi 0, %s32
    %p29 = scmp.ge.s32.totalorder %s28, 4
    %s38 = sphi 0, %s40
    %s41 = sphi 0, %s38
    %s42 = sphi 0, %s41
    %s58 = sphi 0, %s42
    %s62 = sphi 0, %s62
    %s64 = sphi 0, %s62
    %s65 = sphi 0, %s64
    %s79 = sphi 0, %s65
    %s83 = sphi 0, %s83
    %s85 = sphi 0, %s83
    %s86 = sphi 0, %s85
    %s100 = sphi 0, %s86
    %s104 = sphi 0, %s104
    %s106 = sphi 0, %s104
    %s107 = sphi 0, %s106
    %s121 = sphi 0, %s107
    %s125 = sphi 0, %s125
    %s127 = sphi 0, %s125
    %s128 = sphi 0, %s127
    %s142 = sphi 0, %s128
    %s146 = sphi 0, %s146
    %s148 = sphi 0, %s146
    %s149 = sphi 0, %s148
    %s163 = sphi 0, %s149
    %s167 = sphi 0, %s167
    %s169 = sphi 0, %s167
    %s170 = sphi 0, %s169
    %s184 = sphi 0, %s170
    %s188 = sphi 0, %s188
    %s190 = sphi 0, %s188
    %s191 = sphi 0, %s190
    %s205 = sphi 0, %s191
    %s209 = sphi 0, %s209
    %s211 = sphi 0, %s209
    %s212 = sphi 0, %s211
    %s226 = sphi 0, %s212
    %s230 = sphi 0, %s230
    %s232 = sphi 0, %s230
    %s233 = sphi 0, %s232
    %s247 = sphi 0, %s233
    %s251 = sphi 0, %s251
    %s253 = sphi 0, %s251
    %s254 = sphi 0, %s253
    %s268 = sphi 0, %s254
    %s272 = sphi 0, %s272
    %s274 = sphi 0, %s272
    %s275 = sphi 0, %s274
    %s289 = sphi 0, %s275
    %s293 = sphi 0, %s293
    %s295 = sphi 0, %s293
    %s296 = sphi 0, %s295
    %s310 = sphi 0, %s296
    %s314 = sphi 0, %s314
    %s316 = sphi 0, %s314
    %s317 = sphi 0, %s316
    %s331 = sphi 0, %s317
    %s335 = sphi 0, %s335
    %s337 = sphi 0, %s335
    %s338 = sphi 0, %s337
    %s352 = sphi 0, %s338
    %s356 = sphi 0, %s356
    %s358 = sphi 0, %s356
    %s359 = sphi 0, %s358
    %s373 = sphi 0, %s359
    %s377 = sphi 0, %s377
    %s379 = sphi 0, %s377
    %s380 = sphi 0, %s379
    %s394 = sphi 0, %s380
    %s398 = sphi 0, %s398
    %s400 = sphi 0, %s398
    %s401 = sphi 0, %s400
    %s415 = sphi 0, %s401
    %s419 = sphi 0, %s419
    %s421 = sphi 0, %s419
    %s422 = sphi 0, %s421
    %s436 = sphi 0, %s422
    %s440 = sphi 0, %s440
    %s442 = sphi 0, %s440
    %s443 = sphi 0, %s442
    %s457 = sphi 0, %s443
    %s461 = sphi 0, %s461
    %s463 = sphi 0, %s461
    %s464 = sphi 0, %s463
    %s478 = sphi 0, %s464
    %s482 = sphi 0, %s482
    %s484 = sphi 0, %s482
    %s485 = sphi 0, %s484
    %s499 = sphi 0, %s485
    %s505 = sphi 0, %s507
    %s508 = sphi 0, %s505
    %s509 = sphi 0, %s508
    %s525 = sphi 0, %s509
  $region4: #{forward.1} parent=0 // loop_header_branch
    %31 = sbr.rel (%p29) target = $region8
  $region5: #{forward.1} parent=0 // loop_body
    %s33 = ssub.s32 %s28, 1
    %s34 = ssub.s32 %s28, 2
    %s35 = sadd.s32 %s28, 1
    %s36 = ssub.s32 %s28, %s35
    %p37 = scmp.eq.s32.totalorder %s36, 0
    %s39 = sadd.s32 %s38, 1
    %s40 = scalar_select %p37, %s38, %s39
    %p43 = pneg %p37
    %p44 = scmp.eq.s32.totalorder %s28, 1
    %p45 = por %p43, %p44
    %p46 = scmp.ne.s32.totalorder %s38, %s41
    %p47 = scmp.eq.s32.totalorder %s28, 0
    %p48 = por %p46, %p47
    %p49 = scmp.ne.s32.totalorder %s38, %s41
    %p50 = scmp.eq.s32.totalorder %s33, 1
    %p51 = por %p49, %p50
    %p52 = scmp.ne.s32.totalorder %s41, %s42
    %p53 = scmp.eq.s32.totalorder %s33, 0
    %p54 = por %p52, %p53
    %p55 = scmp.ne.s32.totalorder %s41, %s42
    %p56 = scmp.eq.s32.totalorder %s34, 1
    %p57 = por %p55, %p56
    %p59 = scmp.ne.s32.totalorder %s42, %s58
    %p60 = scmp.eq.s32.totalorder %s34, 0
    %p61 = por %p59, %p60
    %s63 = sadd.s32 %s62, 1
    %p66 = scmp.eq.s32.totalorder %s28, 1
    %p67 = scmp.ne.s32.totalorder %s62, %s64
    %p68 = scmp.eq.s32.totalorder %s28, 0
    %p69 = por %p67, %p68
    %p70 = scmp.ne.s32.totalorder %s62, %s64
    %p71 = scmp.eq.s32.totalorder %s33, 1
    %p72 = por %p70, %p71
    %p73 = scmp.ne.s32.totalorder %s64, %s65
    %p74 = scmp.eq.s32.totalorder %s33, 0
    %p75 = por %p73, %p74
    %p76 = scmp.ne.s32.totalorder %s64, %s65
    %p77 = scmp.eq.s32.totalorder %s34, 1
    %p78 = por %p76, %p77
    %p80 = scmp.ne.s32.totalorder %s65, %s79
    %p81 = scmp.eq.s32.totalorder %s34, 0
    %p82 = por %p80, %p81
    %s84 = sadd.s32 %s83, 1
    %p87 = scmp.eq.s32.totalorder %s28, 1
    %p88 = scmp.ne.s32.totalorder %s83, %s85
    %p89 = scmp.eq.s32.totalorder %s28, 0
    %p90 = por %p88, %p89
    %p91 = scmp.ne.s32.totalorder %s83, %s85
    %p92 = scmp.eq.s32.totalorder %s33, 1
    %p93 = por %p91, %p92
    %p94 = scmp.ne.s32.totalorder %s85, %s86
    %p95 = scmp.eq.s32.totalorder %s33, 0
    %p96 = por %p94, %p95
    %p97 = scmp.ne.s32.totalorder %s85, %s86
    %p98 = scmp.eq.s32.totalorder %s34, 1
    %p99 = por %p97, %p98
    %p101 = scmp.ne.s32.totalorder %s86, %s100
    %p102 = scmp.eq.s32.totalorder %s34, 0
    %p103 = por %p101, %p102
    %s105 = sadd.s32 %s104, 1
    %p108 = scmp.eq.s32.totalorder %s28, 1
    %p109 = scmp.ne.s32.totalorder %s104, %s106
    %p110 = scmp.eq.s32.totalorder %s28, 0
    %p111 = por %p109, %p110
    %p112 = scmp.ne.s32.totalorder %s104, %s106
    %p113 = scmp.eq.s32.totalorder %s33, 1
    %p114 = por %p112, %p113
    %p115 = scmp.ne.s32.totalorder %s106, %s107
    %p116 = scmp.eq.s32.totalorder %s33, 0
    %p117 = por %p115, %p116
    %p118 = scmp.ne.s32.totalorder %s106, %s107
    %p119 = scmp.eq.s32.totalorder %s34, 1
    %p120 = por %p118, %p119
    %p122 = scmp.ne.s32.totalorder %s107, %s121
    %p123 = scmp.eq.s32.totalorder %s34, 0
    %p124 = por %p122, %p123
    %s126 = sadd.s32 %s125, 1
    %p129 = scmp.eq.s32.totalorder %s28, 1
    %p130 = scmp.ne.s32.totalorder %s125, %s127
    %p131 = scmp.eq.s32.totalorder %s28, 0
    %p132 = por %p130, %p131
    %p133 = scmp.ne.s32.totalorder %s125, %s127
    %p134 = scmp.eq.s32.totalorder %s33, 1
    %p135 = por %p133, %p134
    %p136 = scmp.ne.s32.totalorder %s127, %s128
    %p137 = scmp.eq.s32.totalorder %s33, 0
    %p138 = por %p136, %p137
    %p139 = scmp.ne.s32.totalorder %s127, %s128
    %p140 = scmp.eq.s32.totalorder %s34, 1
    %p141 = por %p139, %p140
    %p143 = scmp.ne.s32.totalorder %s128, %s142
    %p144 = scmp.eq.s32.totalorder %s34, 0
    %p145 = por %p143, %p144
    %s147 = sadd.s32 %s146, 1
    %p150 = scmp.eq.s32.totalorder %s28, 1
    %p151 = scmp.ne.s32.totalorder %s146, %s148
    %p152 = scmp.eq.s32.totalorder %s28, 0
    %p153 = por %p151, %p152
    %p154 = scmp.ne.s32.totalorder %s146, %s148
    %p155 = scmp.eq.s32.totalorder %s33, 1
    %p156 = por %p154, %p155
    %p157 = scmp.ne.s32.totalorder %s148, %s149
    %p158 = scmp.eq.s32.totalorder %s33, 0
    %p159 = por %p157, %p158
    %p160 = scmp.ne.s32.totalorder %s148, %s149
    %p161 = scmp.eq.s32.totalorder %s34, 1
    %p162 = por %p160, %p161
    %p164 = scmp.ne.s32.totalorder %s149, %s163
    %p165 = scmp.eq.s32.totalorder %s34, 0
    %p166 = por %p164, %p165
    %s168 = sadd.s32 %s167, 1
    %p171 = scmp.eq.s32.totalorder %s28, 1
    %p172 = scmp.ne.s32.totalorder %s167, %s169
    %p173 = scmp.eq.s32.totalorder %s28, 0
    %p174 = por %p172, %p173
    %p175 = scmp.ne.s32.totalorder %s167, %s169
    %p176 = scmp.eq.s32.totalorder %s33, 1
    %p177 = por %p175, %p176
    %p178 = scmp.ne.s32.totalorder %s169, %s170
    %p179 = scmp.eq.s32.totalorder %s33, 0
    %p180 = por %p178, %p179
    %p181 = scmp.ne.s32.totalorder %s169, %s170
    %p182 = scmp.eq.s32.totalorder %s34, 1
    %p183 = por %p181, %p182
    %p185 = scmp.ne.s32.totalorder %s170, %s184
    %p186 = scmp.eq.s32.totalorder %s34, 0
    %p187 = por %p185, %p186
    %s189 = sadd.s32 %s188, 1
    %p192 = scmp.eq.s32.totalorder %s28, 1
    %p193 = scmp.ne.s32.totalorder %s188, %s190
    %p194 = scmp.eq.s32.totalorder %s28, 0
    %p195 = por %p193, %p194
    %p196 = scmp.ne.s32.totalorder %s188, %s190
    %p197 = scmp.eq.s32.totalorder %s33, 1
    %p198 = por %p196, %p197
    %p199 = scmp.ne.s32.totalorder %s190, %s191
    %p200 = scmp.eq.s32.totalorder %s33, 0
    %p201 = por %p199, %p200
    %p202 = scmp.ne.s32.totalorder %s190, %s191
    %p203 = scmp.eq.s32.totalorder %s34, 1
    %p204 = por %p202, %p203
    %p206 = scmp.ne.s32.totalorder %s191, %s205
    %p207 = scmp.eq.s32.totalorder %s34, 0
    %p208 = por %p206, %p207
    %s210 = sadd.s32 %s209, 1
    %p213 = scmp.eq.s32.totalorder %s28, 1
    %p214 = scmp.ne.s32.totalorder %s209, %s211
    %p215 = scmp.eq.s32.totalorder %s28, 0
    %p216 = por %p214, %p215
    %p217 = scmp.ne.s32.totalorder %s209, %s211
    %p218 = scmp.eq.s32.totalorder %s33, 1
    %p219 = por %p217, %p218
    %p220 = scmp.ne.s32.totalorder %s211, %s212
    %p221 = scmp.eq.s32.totalorder %s33, 0
    %p222 = por %p220, %p221
    %p223 = scmp.ne.s32.totalorder %s211, %s212
    %p224 = scmp.eq.s32.totalorder %s34, 1
    %p225 = por %p223, %p224
    %p227 = scmp.ne.s32.totalorder %s212, %s226
    %p228 = scmp.eq.s32.totalorder %s34, 0
    %p229 = por %p227, %p228
    %s231 = sadd.s32 %s230, 1
    %p234 = scmp.eq.s32.totalorder %s28, 1
    %p235 = scmp.ne.s32.totalorder %s230, %s232
    %p236 = scmp.eq.s32.totalorder %s28, 0
    %p237 = por %p235, %p236
    %p238 = scmp.ne.s32.totalorder %s230, %s232
    %p239 = scmp.eq.s32.totalorder %s33, 1
    %p240 = por %p238, %p239
    %p241 = scmp.ne.s32.totalorder %s232, %s233
    %p242 = scmp.eq.s32.totalorder %s33, 0
    %p243 = por %p241, %p242
    %p244 = scmp.ne.s32.totalorder %s232, %s233
    %p245 = scmp.eq.s32.totalorder %s34, 1
    %p246 = por %p244, %p245
    %p248 = scmp.ne.s32.totalorder %s233, %s247
    %p249 = scmp.eq.s32.totalorder %s34, 0
    %p250 = por %p248, %p249
    %s252 = sadd.s32 %s251, 1
    %p255 = scmp.eq.s32.totalorder %s28, 1
    %p256 = scmp.ne.s32.totalorder %s251, %s253
    %p257 = scmp.eq.s32.totalorder %s28, 0
    %p258 = por %p256, %p257
    %p259 = scmp.ne.s32.totalorder %s251, %s253
    %p260 = scmp.eq.s32.totalorder %s33, 1
    %p261 = por %p259, %p260
    %p262 = scmp.ne.s32.totalorder %s253, %s254
    %p263 = scmp.eq.s32.totalorder %s33, 0
    %p264 = por %p262, %p263
    %p265 = scmp.ne.s32.totalorder %s253, %s254
    %p266 = scmp.eq.s32.totalorder %s34, 1
    %p267 = por %p265, %p266
    %p269 = scmp.ne.s32.totalorder %s254, %s268
    %p270 = scmp.eq.s32.totalorder %s34, 0
    %p271 = por %p269, %p270
    %s273 = sadd.s32 %s272, 1
    %p276 = scmp.eq.s32.totalorder %s28, 1
    %p277 = scmp.ne.s32.totalorder %s272, %s274
    %p278 = scmp.eq.s32.totalorder %s28, 0
    %p279 = por %p277, %p278
    %p280 = scmp.ne.s32.totalorder %s272, %s274
    %p281 = scmp.eq.s32.totalorder %s33, 1
    %p282 = por %p280, %p281
    %p283 = scmp.ne.s32.totalorder %s274, %s275
    %p284 = scmp.eq.s32.totalorder %s33, 0
    %p285 = por %p283, %p284
    %p286 = scmp.ne.s32.totalorder %s274, %s275
    %p287 = scmp.eq.s32.totalorder %s34, 1
    %p288 = por %p286, %p287
    %p290 = scmp.ne.s32.totalorder %s275, %s289
    %p291 = scmp.eq.s32.totalorder %s34, 0
    %p292 = por %p290, %p291
    %s294 = sadd.s32 %s293, 1
    %p297 = scmp.eq.s32.totalorder %s28, 1
    %p298 = scmp.ne.s32.totalorder %s293, %s295
    %p299 = scmp.eq.s32.totalorder %s28, 0
    %p300 = por %p298, %p299
    %p301 = scmp.ne.s32.totalorder %s293, %s295
    %p302 = scmp.eq.s32.totalorder %s33, 1
    %p303 = por %p301, %p302
    %p304 = scmp.ne.s32.totalorder %s295, %s296
    %p305 = scmp.eq.s32.totalorder %s33, 0
    %p306 = por %p304, %p305
    %p307 = scmp.ne.s32.totalorder %s295, %s296
    %p308 = scmp.eq.s32.totalorder %s34, 1
    %p309 = por %p307, %p308
    %p311 = scmp.ne.s32.totalorder %s296, %s310
    %p312 = scmp.eq.s32.totalorder %s34, 0
    %p313 = por %p311, %p312
    %s315 = sadd.s32 %s314, 1
    %p318 = scmp.eq.s32.totalorder %s28, 1
    %p319 = scmp.ne.s32.totalorder %s314, %s316
    %p320 = scmp.eq.s32.totalorder %s28, 0
    %p321 = por %p319, %p320
    %p322 = scmp.ne.s32.totalorder %s314, %s316
    %p323 = scmp.eq.s32.totalorder %s33, 1
    %p324 = por %p322, %p323
    %p325 = scmp.ne.s32.totalorder %s316, %s317
    %p326 = scmp.eq.s32.totalorder %s33, 0
    %p327 = por %p325, %p326
    %p328 = scmp.ne.s32.totalorder %s316, %s317
    %p329 = scmp.eq.s32.totalorder %s34, 1
    %p330 = por %p328, %p329
    %p332 = scmp.ne.s32.totalorder %s317, %s331
    %p333 = scmp.eq.s32.totalorder %s34, 0
    %p334 = por %p332, %p333
    %s336 = sadd.s32 %s335, 1
    %p339 = scmp.eq.s32.totalorder %s28, 1
    %p340 = scmp.ne.s32.totalorder %s335, %s337
    %p341 = scmp.eq.s32.totalorder %s28, 0
    %p342 = por %p340, %p341
    %p343 = scmp.ne.s32.totalorder %s335, %s337
    %p344 = scmp.eq.s32.totalorder %s33, 1
    %p345 = por %p343, %p344
    %p346 = scmp.ne.s32.totalorder %s337, %s338
    %p347 = scmp.eq.s32.totalorder %s33, 0
    %p348 = por %p346, %p347
    %p349 = scmp.ne.s32.totalorder %s337, %s338
    %p350 = scmp.eq.s32.totalorder %s34, 1
    %p351 = por %p349, %p350
    %p353 = scmp.ne.s32.totalorder %s338, %s352
    %p354 = scmp.eq.s32.totalorder %s34, 0
    %p355 = por %p353, %p354
    %s357 = sadd.s32 %s356, 1
    %p360 = scmp.eq.s32.totalorder %s28, 1
    %p361 = scmp.ne.s32.totalorder %s356, %s358
    %p362 = scmp.eq.s32.totalorder %s28, 0
    %p363 = por %p361, %p362
    %p364 = scmp.ne.s32.totalorder %s356, %s358
    %p365 = scmp.eq.s32.totalorder %s33, 1
    %p366 = por %p364, %p365
    %p367 = scmp.ne.s32.totalorder %s358, %s359
    %p368 = scmp.eq.s32.totalorder %s33, 0
    %p369 = por %p367, %p368
    %p370 = scmp.ne.s32.totalorder %s358, %s359
    %p371 = scmp.eq.s32.totalorder %s34, 1
    %p372 = por %p370, %p371
    %p374 = scmp.ne.s32.totalorder %s359, %s373
    %p375 = scmp.eq.s32.totalorder %s34, 0
    %p376 = por %p374, %p375
    %s378 = sadd.s32 %s377, 1
    %p381 = scmp.eq.s32.totalorder %s28, 1
    %p382 = scmp.ne.s32.totalorder %s377, %s379
    %p383 = scmp.eq.s32.totalorder %s28, 0
    %p384 = por %p382, %p383
    %p385 = scmp.ne.s32.totalorder %s377, %s379
    %p386 = scmp.eq.s32.totalorder %s33, 1
    %p387 = por %p385, %p386
    %p388 = scmp.ne.s32.totalorder %s379, %s380
    %p389 = scmp.eq.s32.totalorder %s33, 0
    %p390 = por %p388, %p389
    %p391 = scmp.ne.s32.totalorder %s379, %s380
    %p392 = scmp.eq.s32.totalorder %s34, 1
    %p393 = por %p391, %p392
    %p395 = scmp.ne.s32.totalorder %s380, %s394
    %p396 = scmp.eq.s32.totalorder %s34, 0
    %p397 = por %p395, %p396
    %s399 = sadd.s32 %s398, 1
    %p402 = scmp.eq.s32.totalorder %s28, 1
    %p403 = scmp.ne.s32.totalorder %s398, %s400
    %p404 = scmp.eq.s32.totalorder %s28, 0
    %p405 = por %p403, %p404
    %p406 = scmp.ne.s32.totalorder %s398, %s400
    %p407 = scmp.eq.s32.totalorder %s33, 1
    %p408 = por %p406, %p407
    %p409 = scmp.ne.s32.totalorder %s400, %s401
    %p410 = scmp.eq.s32.totalorder %s33, 0
    %p411 = por %p409, %p410
    %p412 = scmp.ne.s32.totalorder %s400, %s401
    %p413 = scmp.eq.s32.totalorder %s34, 1
    %p414 = por %p412, %p413
    %p416 = scmp.ne.s32.totalorder %s401, %s415
    %p417 = scmp.eq.s32.totalorder %s34, 0
    %p418 = por %p416, %p417
    %s420 = sadd.s32 %s419, 1
    %p423 = scmp.eq.s32.totalorder %s28, 1
    %p424 = scmp.ne.s32.totalorder %s419, %s421
    %p425 = scmp.eq.s32.totalorder %s28, 0
    %p426 = por %p424, %p425
    %p427 = scmp.ne.s32.totalorder %s419, %s421
    %p428 = scmp.eq.s32.totalorder %s33, 1
    %p429 = por %p427, %p428
    %p430 = scmp.ne.s32.totalorder %s421, %s422
    %p431 = scmp.eq.s32.totalorder %s33, 0
    %p432 = por %p430, %p431
    %p433 = scmp.ne.s32.totalorder %s421, %s422
    %p434 = scmp.eq.s32.totalorder %s34, 1
    %p435 = por %p433, %p434
    %p437 = scmp.ne.s32.totalorder %s422, %s436
    %p438 = scmp.eq.s32.totalorder %s34, 0
    %p439 = por %p437, %p438
    %s441 = sadd.s32 %s440, 1
    %p444 = scmp.eq.s32.totalorder %s28, 1
    %p445 = scmp.ne.s32.totalorder %s440, %s442
    %p446 = scmp.eq.s32.totalorder %s28, 0
    %p447 = por %p445, %p446
    %p448 = scmp.ne.s32.totalorder %s440, %s442
    %p449 = scmp.eq.s32.totalorder %s33, 1
    %p450 = por %p448, %p449
    %p451 = scmp.ne.s32.totalorder %s442, %s443
    %p452 = scmp.eq.s32.totalorder %s33, 0
    %p453 = por %p451, %p452
    %p454 = scmp.ne.s32.totalorder %s442, %s443
    %p455 = scmp.eq.s32.totalorder %s34, 1
    %p456 = por %p454, %p455
    %p458 = scmp.ne.s32.totalorder %s443, %s457
    %p459 = scmp.eq.s32.totalorder %s34, 0
    %p460 = por %p458, %p459
    %s462 = sadd.s32 %s461, 1
    %p465 = scmp.eq.s32.totalorder %s28, 1
    %p466 = scmp.ne.s32.totalorder %s461, %s463
    %p467 = scmp.eq.s32.totalorder %s28, 0
    %p468 = por %p466, %p467
    %p469 = scmp.ne.s32.totalorder %s461, %s463
    %p470 = scmp.eq.s32.totalorder %s33, 1
    %p471 = por %p469, %p470
    %p472 = scmp.ne.s32.totalorder %s463, %s464
    %p473 = scmp.eq.s32.totalorder %s33, 0
    %p474 = por %p472, %p473
    %p475 = scmp.ne.s32.totalorder %s463, %s464
    %p476 = scmp.eq.s32.totalorder %s34, 1
    %p477 = por %p475, %p476
    %p479 = scmp.ne.s32.totalorder %s464, %s478
    %p480 = scmp.eq.s32.totalorder %s34, 0
    %p481 = por %p479, %p480
    %s483 = sadd.s32 %s482, 1
    %p486 = scmp.eq.s32.totalorder %s28, 1
    %p487 = scmp.ne.s32.totalorder %s482, %s484
    %p488 = scmp.eq.s32.totalorder %s28, 0
    %p489 = por %p487, %p488
    %p490 = scmp.ne.s32.totalorder %s482, %s484
    %p491 = scmp.eq.s32.totalorder %s33, 1
    %p492 = por %p490, %p491
    %p493 = scmp.ne.s32.totalorder %s484, %s485
    %p494 = scmp.eq.s32.totalorder %s33, 0
    %p495 = por %p493, %p494
    %p496 = scmp.ne.s32.totalorder %s484, %s485
    %p497 = scmp.eq.s32.totalorder %s34, 1
    %p498 = por %p496, %p497
    %p500 = scmp.ne.s32.totalorder %s485, %s499
    %p501 = scmp.eq.s32.totalorder %s34, 0
    %p502 = por %p500, %p501
    %s503 = ssub.s32 %s28, %s35
    %p504 = scmp.eq.s32.totalorder %s503, 0
    %s506 = sadd.s32 %s505, 1
    %s507 = scalar_select %p504, %s505, %s506
    %p510 = pneg %p504
    %p511 = scmp.eq.s32.totalorder %s28, 1
    %p512 = por %p510, %p511
    %p513 = scmp.ne.s32.totalorder %s505, %s508
    %p514 = scmp.eq.s32.totalorder %s28, 0
    %p515 = por %p513, %p514
    %p516 = scmp.ne.s32.totalorder %s505, %s508
    %p517 = scmp.eq.s32.totalorder %s33, 1
    %p518 = por %p516, %p517
    %p519 = scmp.ne.s32.totalorder %s508, %s509
    %p520 = scmp.eq.s32.totalorder %s33, 0
    %p521 = por %p519, %p520
    %p522 = scmp.ne.s32.totalorder %s508, %s509
    %p523 = scmp.eq.s32.totalorder %s34, 1
    %p524 = por %p522, %p523
    %p526 = scmp.ne.s32.totalorder %s509, %s525
    %p527 = scmp.eq.s32.totalorder %s34, 0
    %p528 = por %p526, %p527
    %p529 = scmp.le.s32.totalorder 1, %s28
    %p530 = scmp.lt.s32.totalorder %s28, 3
    %p531 = pnand %p529, %p530
    %p532 = pneg %p531
    // Predicated region
    $region9: #{forward.1} parent=5 // pred_check
      _
    $region10: #{forward.1} parent=5 // pred_check_branch
      %534 = sbr.rel (%p531) target = $region12
    $region11: #{forward.1} parent=5 // pred_region
      %s535 = ssub.s32 %s28, 1
      // Predicated region
      $region13: #{forward.1} parent=11 // pred_check
        %p536 = pneg %p75
      $region14: #{forward.1} parent=11 // pred_check_branch
        %538 = sbr.rel (%p536) target = $region16
      $region15: #{forward.1} parent=11 // pred_region
        _
      $region16: #{forward.1} parent=11 // pred_fallthru
        _
      // Predicated region
      $region17: #{forward.1} parent=11 // pred_check
        %p539 = pneg %p96
      $region18: #{forward.1} parent=11 // pred_check_branch
        %541 = sbr.rel (%p539) target = $region20
      $region19: #{forward.1} parent=11 // pred_region
        _
      $region20: #{forward.1} parent=11 // pred_fallthru
        _
      // Predicated region
      $region21: #{forward.1} parent=11 // pred_check
        %p542 = pneg %p117
      $region22: #{forward.1} parent=11 // pred_check_branch
        %544 = sbr.rel (%p542) target = $region24
      $region23: #{forward.1} parent=11 // pred_region
        _
      $region24: #{forward.1} parent=11 // pred_fallthru
        _
      // Predicated region
      $region25: #{forward.1} parent=11 // pred_check
        %p545 = pneg %p138
      $region26: #{forward.1} parent=11 // pred_check_branch
        %547 = sbr.rel (%p545) target = $region28
      $region27: #{forward.1} parent=11 // pred_region
        _
      $region28: #{forward.1} parent=11 // pred_fallthru
        _
      // Predicated region
      $region29: #{forward.1} parent=11 // pred_check
        %p548 = pneg %p159
      $region30: #{forward.1} parent=11 // pred_check_branch
        %550 = sbr.rel (%p548) target = $region32
      $region31: #{forward.1} parent=11 // pred_region
        _
      $region32: #{forward.1} parent=11 // pred_fallthru
        _
      // Predicated region
      $region33: #{forward.1} parent=11 // pred_check
        %p551 = pneg %p180
      $region34: #{forward.1} parent=11 // pred_check_branch
        %553 = sbr.rel (%p551) target = $region36
      $region35: #{forward.1} parent=11 // pred_region
        _
      $region36: #{forward.1} parent=11 // pred_fallthru
        _
      // Predicated region
      $region37: #{forward.1} parent=11 // pred_check
        %p554 = pneg %p201
      $region38: #{forward.1} parent=11 // pred_check_branch
        %556 = sbr.rel (%p554) target = $region40
      $region39: #{forward.1} parent=11 // pred_region
        _
      $region40: #{forward.1} parent=11 // pred_fallthru
        _
      // Predicated region
      $region41: #{forward.1} parent=11 // pred_check
        %p557 = pneg %p222
      $region42: #{forward.1} parent=11 // pred_check_branch
        %559 = sbr.rel (%p557) target = $region44
      $region43: #{forward.1} parent=11 // pred_region
        _
      $region44: #{forward.1} parent=11 // pred_fallthru
        _
      // Predicated region
      $region45: #{forward.1} parent=11 // pred_check
        %p560 = pneg %p243
      $region46: #{forward.1} parent=11 // pred_check_branch
        %562 = sbr.rel (%p560) target = $region48
      $region47: #{forward.1} parent=11 // pred_region
        _
      $region48: #{forward.1} parent=11 // pred_fallthru
        _
      // Predicated region
      $region49: #{forward.1} parent=11 // pred_check
        %p563 = pneg %p264
      $region50: #{forward.1} parent=11 // pred_check_branch
        %565 = sbr.rel (%p563) target = $region52
      $region51: #{forward.1} parent=11 // pred_region
        _
      $region52: #{forward.1} parent=11 // pred_fallthru
        _
      // Predicated region
      $region53: #{forward.1} parent=11 // pred_check
        %p566 = pneg %p285
      $region54: #{forward.1} parent=11 // pred_check_branch
        %568 = sbr.rel (%p566) target = $region56
      $region55: #{forward.1} parent=11 // pred_region
        _
      $region56: #{forward.1} parent=11 // pred_fallthru
        _
      // Predicated region
      $region57: #{forward.1} parent=11 // pred_check
        %p569 = pneg %p306
      $region58: #{forward.1} parent=11 // pred_check_branch
        %571 = sbr.rel (%p569) target = $region60
      $region59: #{forward.1} parent=11 // pred_region
        _
      $region60: #{forward.1} parent=11 // pred_fallthru
        _
      // Predicated region
      $region61: #{forward.1} parent=11 // pred_check
        %p572 = pneg %p327
      $region62: #{forward.1} parent=11 // pred_check_branch
        %574 = sbr.rel (%p572) target = $region64
      $region63: #{forward.1} parent=11 // pred_region
        _
      $region64: #{forward.1} parent=11 // pred_fallthru
        _
      // Predicated region
      $region65: #{forward.1} parent=11 // pred_check
        %p575 = pneg %p348
      $region66: #{forward.1} parent=11 // pred_check_branch
        %577 = sbr.rel (%p575) target = $region68
      $region67: #{forward.1} parent=11 // pred_region
        _
      $region68: #{forward.1} parent=11 // pred_fallthru
        _
      // Predicated region
      $region69: #{forward.1} parent=11 // pred_check
        %p578 = pneg %p369
      $region70: #{forward.1} parent=11 // pred_check_branch
        %580 = sbr.rel (%p578) target = $region72
      $region71: #{forward.1} parent=11 // pred_region
        _
      $region72: #{forward.1} parent=11 // pred_fallthru
        _
      // Predicated region
      $region73: #{forward.1} parent=11 // pred_check
        %p581 = pneg %p390
      $region74: #{forward.1} parent=11 // pred_check_branch
        %583 = sbr.rel (%p581) target = $region76
      $region75: #{forward.1} parent=11 // pred_region
        _
      $region76: #{forward.1} parent=11 // pred_fallthru
        _
      // Predicated region
      $region77: #{forward.1} parent=11 // pred_check
        %p584 = pneg %p411
      $region78: #{forward.1} parent=11 // pred_check_branch
        %586 = sbr.rel (%p584) target = $region80
      $region79: #{forward.1} parent=11 // pred_region
        _
      $region80: #{forward.1} parent=11 // pred_fallthru
        _
      // Predicated region
      $region81: #{forward.1} parent=11 // pred_check
        %p587 = pneg %p432
      $region82: #{forward.1} parent=11 // pred_check_branch
        %589 = sbr.rel (%p587) target = $region84
      $region83: #{forward.1} parent=11 // pred_region
        _
      $region84: #{forward.1} parent=11 // pred_fallthru
        _
      // Predicated region
      $region85: #{forward.1} parent=11 // pred_check
        %p590 = pneg %p453
      $region86: #{forward.1} parent=11 // pred_check_branch
        %592 = sbr.rel (%p590) target = $region88
      $region87: #{forward.1} parent=11 // pred_region
        _
      $region88: #{forward.1} parent=11 // pred_fallthru
        _
      // Predicated region
      $region89: #{forward.1} parent=11 // pred_check
        %p593 = pneg %p474
      $region90: #{forward.1} parent=11 // pred_check_branch
        %595 = sbr.rel (%p593) target = $region92
      $region91: #{forward.1} parent=11 // pred_region
        _
      $region92: #{forward.1} parent=11 // pred_fallthru
        _
      // Predicated region
      $region93: #{forward.1} parent=11 // pred_check
        %p596 = pneg %p495
      $region94: #{forward.1} parent=11 // pred_check_branch
        %598 = sbr.rel (%p596) target = $region96
      $region95: #{forward.1} parent=11 // pred_region
        _
      $region96: #{forward.1} parent=11 // pred_fallthru
        _
    $region12: #{forward.1} parent=5 // pred_fallthru
      _
    %p599 = scmp.lt.s32.totalorder %s28, 2
    // Predicated region
    $region97: #{forward.1} parent=5 // pred_check
      %p600 = pneg %p599
    $region98: #{forward.1} parent=5 // pred_check_branch
      %602 = sbr.rel (%p600) target = $region100
    $region99: #{forward.1} parent=5 // pred_region
      // Predicated region
      $region101: #{forward.1} parent=99 // pred_check
        %p603 = pneg %p48
      $region102: #{forward.1} parent=99 // pred_check_branch
        %605 = sbr.rel (%p603) target = $region104
      $region103: #{forward.1} parent=99 // pred_region
        %s606 = smul.u32 2, %s28
        %p607 = scmp.lt.s32.totalorder %s606, 3
        %s608 = scalar_select %p607, %s606, 3
        %s609 = smul.addr %s608, 2
        %s610 = smul.addr %s609, 8
        %s611 = scalar_lea.vmem %s0, %s610
        %s612 = smul.u32 2, %s28
      $region104: #{forward.1} parent=99 // pred_fallthru
        _
    $region100: #{forward.1} parent=5 // pred_fallthru
      _
    %p613 = scmp.le.s32.totalorder 1, %s28
    %p614 = scmp.lt.s32.totalorder %s28, 3
    %p615 = pnand %p613, %p614
    %p616 = pneg %p615
    // Predicated region
    $region105: #{forward.1} parent=5 // pred_check
      _
    $region106: #{forward.1} parent=5 // pred_check_branch
      %618 = sbr.rel (%p615) target = $region108
    $region107: #{forward.1} parent=5 // pred_region
      %s619 = ssub.s32 %s28, 1
      %s620 = smul.u32 2, %s33
      %p621 = scmp.lt.s32.totalorder %s620, 3
      %s622 = scalar_select %p621, %s620, 3
      %s623 = smul.addr %s622, 2
      %s624 = smul.addr %s623, 8
      %s625 = scalar_lea.vmem %s0, %s624
      %p626 = pneg %p54
      %p627 = pneg %p51
      %p628 = pneg %p75
      %p629 = pneg %p72
      %p630 = pneg %p96
      %p631 = pneg %p93
      %p632 = pneg %p117
      %p633 = pneg %p114
      %p634 = pneg %p138
      %p635 = pneg %p135
      %p636 = pneg %p159
      %p637 = pneg %p156
      %p638 = pneg %p180
      %p639 = pneg %p177
      %p640 = pneg %p201
      %p641 = pneg %p198
      %p642 = pneg %p222
      %p643 = pneg %p219
      %p644 = pneg %p243
      %p645 = pneg %p240
      %p646 = pneg %p264
      %p647 = pneg %p261
      %p648 = pneg %p285
      %p649 = pneg %p282
      %p650 = pneg %p306
      %p651 = pneg %p303
      %p652 = pneg %p327
      %p653 = pneg %p324
      %p654 = pneg %p348
      %p655 = pneg %p345
      %p656 = pneg %p369
      %p657 = pneg %p366
      %p658 = pneg %p390
      %p659 = pneg %p387
      %p660 = pneg %p411
      %p661 = pneg %p408
      %p662 = pneg %p432
      %p663 = pneg %p429
      %p664 = pneg %p453
      %p665 = pneg %p450
      %p666 = pneg %p474
      %p667 = pneg %p471
      %p668 = pneg %p495
      %p669 = pneg %p492
      %p670 = pneg %p521
      %p671 = pneg %p518
      %s672 = smul.u32 2, %s33
      %p673 = scmp.lt.s32.totalorder %s672, 3
      %s674 = scalar_select %p673, %s672, 3
      %s675 = smul.addr %s674, 8
      %s676 = scalar_lea.vmem %s22, %s675
      %s677 = smul.u32 2, %s33
      %p678 = scmp.lt.s32.totalorder %s677, 3
      %s679 = scalar_select %p678, %s677, 3
      %s680 = smul.addr %s679, 2
      %s681 = smul.addr %s680, 8
      %s682 = scalar_lea.vmem %s0, %s681
      %s683 = smul.u32 2, %s33
      %s684 = smul.u32 2, %s33
      %p685 = scmp.lt.s32.totalorder %s684, 3
      %s686 = scalar_select %p685, %s684, 3
      %s687 = smul.addr %s686, 8
      %s688 = scalar_lea.vmem %s22, %s687
      %s689 = smul.u32 2, %s33
      %v691 = vld [vmem:[%s682] sm:$0xff]
      %v692 = vld [vmem:[%s682 + $0x8] sm:$0xff]
      %v693 = vld [vmem:[%s682 + $0x10] sm:$0xff]
      %v694 = vld [vmem:[%s682 + $0x18] sm:$0xff]
      %v695 = vld [vmem:[%s10] sm:$0xff]
      %v696 = vld [vmem:[%s10 + $0x8] sm:$0xff]
      %v697 = vld [vmem:[%s11] sm:$0xff]
      %v698 = vld [vmem:[%s11 + $0x8] sm:$0xff]
      %v699 = vld [vmem:[%s12] sm:$0xff]
      %v700 = vld [vmem:[%s13] sm:$0xff]
      %v701 = vld [vmem:[%s2] sm:$0x1]
      %v702 = vpack.c.bf16 %v693, %v691
      %v703 = vpack.c.bf16 %v694, %v692
      %v704 = vld [vmem:[%s1] sm:$0xff]
      %v705 = vld [vmem:[%s1 + $0x8] sm:$0xf]
      %v706 = vld [vmem:[%s1 + $0xc] sm:$0xff]
      %v707 = vld [vmem:[%s1 + $0x14] sm:$0xf]
      %v708 = vld [vmem:[%s1 + $0x18] sm:$0xff]
      %v709 = vld [vmem:[%s1 + $0x20] sm:$0xf]
      %v710 = vld [vmem:[%s1 + $0x24] sm:$0xff]
      %v711 = vld [vmem:[%s1 + $0x2c] sm:$0xf]
      %v712 = vld [vmem:[%s1 + $0x30] sm:$0xff]
      %v713 = vld [vmem:[%s1 + $0x38] sm:$0xf]
      %v714 = vld [vmem:[%s1 + $0x3c] sm:$0xff]
      %v715 = vld [vmem:[%s1 + $0x44] sm:$0xf]
      %v716 = vld [vmem:[%s1 + $0x48] sm:$0xff]
      %v717 = vld [vmem:[%s1 + $0x50] sm:$0xf]
      %v718 = vld [vmem:[%s1 + $0x54] sm:$0xff]
      %v719 = vld [vmem:[%s1 + $0x5c] sm:$0xf]
      %v720 = vld [vmem:[%s1 + $0x60] sm:$0xff]
      %v721 = vld [vmem:[%s1 + $0x68] sm:$0xf]
      %v722 = vld [vmem:[%s1 + $0x6c] sm:$0xff]
      %v723 = vld [vmem:[%s1 + $0x74] sm:$0xf]
      %v724 = vld [vmem:[%s1 + $0x78] sm:$0xff]
      %v725 = vld [vmem:[%s1 + $0x80] sm:$0xf]
      %v726 = vld [vmem:[%s1 + $0x84] sm:$0xff]
      %v727 = vld [vmem:[%s1 + $0x8c] sm:$0xf]
      %v728 = vld [vmem:[%s1 + $0x90] sm:$0xff]
      %v729 = vld [vmem:[%s1 + $0x98] sm:$0xf]
      %v730 = vld [vmem:[%s1 + $0x9c] sm:$0xff]
      %v731 = vld [vmem:[%s1 + $0xa4] sm:$0xf]
      %v732 = vld [vmem:[%s1 + $0xa8] sm:$0xff]
      %v733 = vld [vmem:[%s1 + $0xb0] sm:$0xf]
      %v734 = vld [vmem:[%s1 + $0xb4] sm:$0xff]
      %v735 = vld [vmem:[%s1 + $0xbc] sm:$0xf]
      %v736 = vld [vmem:[%s1 + $0xc0] sm:$0xff]
      %v737 = vld [vmem:[%s1 + $0xc8] sm:$0xf]
      %v738 = vld [vmem:[%s1 + $0xcc] sm:$0xff]
      %v739 = vld [vmem:[%s1 + $0xd4] sm:$0xf]
      %v740 = vld [vmem:[%s1 + $0xd8] sm:$0xff]
      %v741 = vld [vmem:[%s1 + $0xe0] sm:$0xf]
      %v742 = vld [vmem:[%s1 + $0xe4] sm:$0xff]
      %v743 = vld [vmem:[%s1 + $0xec] sm:$0xf]
      %v744 = vld [vmem:[%s1 + $0xf0] sm:$0xff]
      %v745 = vld [vmem:[%s1 + $0xf8] sm:$0xf]
      %v746 = vld [vmem:[%s1 + $0xfc] sm:$0xff]
      %v747 = vld [vmem:[%s1 + $0x104] sm:$0xf]
      %v748 = vld [vmem:[%s1 + $0x108] sm:$0xff]
      %v749 = vld [vmem:[%s1 + $0x110] sm:$0xf]
      %v750 = vld [vmem:[%s1 + $0x114] sm:$0xff]
      %v751 = vld [vmem:[%s1 + $0x11c] sm:$0xf]
      %v800 = vunpack.c.l.b16 %v704
      %v801 = vunpack.c.h.b16 %v704
      %v802 = vunpack.c.l.b16 %v705
      %v803 = vunpack.c.l.b16 %v706
      %v804 = vunpack.c.h.b16 %v706
      %v805 = vunpack.c.l.b16 %v707
      %v806 = vunpack.c.l.b16 %v708
      %v807 = vunpack.c.h.b16 %v708
      %v808 = vunpack.c.l.b16 %v709
      %v809 = vunpack.c.l.b16 %v710
      %v810 = vunpack.c.h.b16 %v710
      %v811 = vunpack.c.l.b16 %v711
      %v812 = vunpack.c.l.b16 %v712
      %v813 = vunpack.c.h.b16 %v712
      %v814 = vunpack.c.l.b16 %v713
      %v815 = vunpack.c.l.b16 %v714
      %v816 = vunpack.c.h.b16 %v714
      %v817 = vunpack.c.l.b16 %v715
      %v818 = vunpack.c.l.b16 %v716
      %v819 = vunpack.c.h.b16 %v716
      %v820 = vunpack.c.l.b16 %v717
      %v821 = vunpack.c.l.b16 %v718
      %v822 = vunpack.c.h.b16 %v718
      %v823 = vunpack.c.l.b16 %v719
      %v824 = vunpack.c.l.b16 %v720
      %v825 = vunpack.c.h.b16 %v720
      %v826 = vunpack.c.l.b16 %v721
      %v827 = vunpack.c.l.b16 %v722
      %v828 = vunpack.c.h.b16 %v722
      %v829 = vunpack.c.l.b16 %v723
      %v830 = vunpack.c.l.b16 %v724
      %v831 = vunpack.c.h.b16 %v724
      %v832 = vunpack.c.l.b16 %v725
      %v833 = vunpack.c.l.b16 %v726
      %v834 = vunpack.c.h.b16 %v726
      %v835 = vunpack.c.l.b16 %v727
      %v836 = vunpack.c.l.b16 %v728
      %v837 = vunpack.c.h.b16 %v728
      %v838 = vunpack.c.l.b16 %v729
      %v839 = vunpack.c.l.b16 %v730
      %v840 = vunpack.c.h.b16 %v730
      %v841 = vunpack.c.l.b16 %v731
      %v842 = vunpack.c.l.b16 %v732
      %v843 = vunpack.c.h.b16 %v732
      %v844 = vunpack.c.l.b16 %v733
      %v845 = vunpack.c.l.b16 %v734
      %v846 = vunpack.c.h.b16 %v734
      %v847 = vunpack.c.l.b16 %v735
      %v848 = vunpack.c.l.b16 %v736
      %v849 = vunpack.c.h.b16 %v736
      %v850 = vunpack.c.l.b16 %v737
      %v851 = vunpack.c.l.b16 %v738
      %v852 = vunpack.c.h.b16 %v738
      %v853 = vunpack.c.l.b16 %v739
      %v854 = vunpack.c.l.b16 %v740
      %v855 = vunpack.c.h.b16 %v740
      %v856 = vunpack.c.l.b16 %v741
      %v857 = vunpack.c.l.b16 %v742
      %v858 = vunpack.c.h.b16 %v742
      %v859 = vunpack.c.l.b16 %v743
      %v860 = vunpack.c.l.b16 %v744
      %v861 = vunpack.c.h.b16 %v744
      %v862 = vunpack.c.l.b16 %v745
      %v863 = vunpack.c.l.b16 %v746
      %v864 = vunpack.c.h.b16 %v746
      %v865 = vunpack.c.l.b16 %v747
      %v866 = vunpack.c.l.b16 %v748
      %v867 = vunpack.c.h.b16 %v748
      %v868 = vunpack.c.l.b16 %v749
      %v869 = vunpack.c.l.b16 %v750
      %v870 = vunpack.c.h.b16 %v750
      %v871 = vunpack.c.l.b16 %v751
      %v872 = vpack.c.b16 %v803, %v800
      %v873 = vpack.c.b16 %v804, %v801
      %v874 = vpack.c.b16 %v805, %v802
      %v875 = vpack.c.b16 %v809, %v806
      %v876 = vpack.c.b16 %v810, %v807
      %v877 = vpack.c.b16 %v811, %v808
      %v878 = vpack.c.b16 %v815, %v812
      %v879 = vpack.c.b16 %v816, %v813
      %v880 = vpack.c.b16 %v817, %v814
      %v881 = vpack.c.b16 %v821, %v818
      %v882 = vpack.c.b16 %v822, %v819
      %v883 = vpack.c.b16 %v823, %v820
      %v884 = vpack.c.b16 %v827, %v824
      %v885 = vpack.c.b16 %v828, %v825
      %v886 = vpack.c.b16 %v829, %v826
      %v887 = vpack.c.b16 %v833, %v830
      %v888 = vpack.c.b16 %v834, %v831
      %v889 = vpack.c.b16 %v835, %v832
      %v890 = vpack.c.b16 %v839, %v836
      %v891 = vpack.c.b16 %v840, %v837
      %v892 = vpack.c.b16 %v841, %v838
      %v893 = vpack.c.b16 %v845, %v842
      %v894 = vpack.c.b16 %v846, %v843
      %v895 = vpack.c.b16 %v847, %v844
      %v896 = vpack.c.b16 %v851, %v848
      %v897 = vpack.c.b16 %v852, %v849
      %v898 = vpack.c.b16 %v853, %v850
      %v899 = vpack.c.b16 %v857, %v854
      %v900 = vpack.c.b16 %v858, %v855
      %v901 = vpack.c.b16 %v859, %v856
      %v902 = vpack.c.b16 %v863, %v860
      %v903 = vpack.c.b16 %v864, %v861
      %v904 = vpack.c.b16 %v865, %v862
      %v905 = vpack.c.b16 %v869, %v866
      %v906 = vpack.c.b16 %v870, %v867
      %v907 = vpack.c.b16 %v871, %v868
      %vm944 = vcmask 523264
      %v946 = vsel %vm944, %v703, 0
      %948 = vmatprep.subr.bf16.mxu0 %v873
      %949 = vmatpush1.bf16.msra.mxu0 %v872
      %950 = vmatprep.subr.bf16.mxu0 %v876
      %951 = vmatpush1.bf16.msra.mxu0 %v875
      %952 = vmatprep.subr.bf16.mxu0 %v879
      %953 = vmatpush1.bf16.msra.mxu0 %v878
      %954 = vmatprep.subr.bf16.mxu0 %v882
      %955 = vmatpush1.bf16.msra.mxu0 %v881
      %956 = vmatprep.subr.bf16.mxu0 %v885
      %957 = vmatpush1.bf16.msra.mxu0 %v884
      %958 = vmatprep.subr.bf16.mxu0 %v888
      %959 = vmatpush1.bf16.msra.mxu0 %v887
      %960 = vmatprep.subr.bf16.mxu0 %v891
      %961 = vmatpush1.bf16.msra.mxu0 %v890
      %962 = vmatprep.subr.bf16.mxu0 %v894
      %963 = vmatpush1.bf16.msra.mxu0 %v893
      %964 = vmatprep.subr.bf16.mxu0 %v897
      %965 = vmatpush1.bf16.msra.mxu0 %v896
      %966 = vmatprep.subr.bf16.mxu0 %v900
      %967 = vmatpush1.bf16.msra.mxu0 %v899
      %968 = vmatprep.subr.bf16.mxu0 %v903
      %969 = vmatpush1.bf16.msra.mxu0 %v902
      %970 = vmatprep.subr.bf16.mxu0 %v906
      %971 = vmatpush1.bf16.msra.mxu0 %v905
      %972 = vmatprep.subr.bf16.mxu0 0
      %973 = vmatpush1.bf16.msra.mxu0 0
      %974 = vmatprep.subr.bf16.mxu0 0
      %975 = vmatpush1.bf16.msra.mxu0 0
      %976 = vmatprep.subr.bf16.mxu0 0
      %977 = vmatpush1.bf16.msra.mxu0 0
      %978 = vmatprep.subr.bf16.mxu0 0
      %979 = vmatpush1.bf16.msra.mxu0 0
      %980 = vmatprep.mubr.bf16.mxu0 %v946
      %981 = vmatmul.mubr.bf16.gmra.mrb[0].mxu0 %v702
      %v982 = vpop.f32.mrb[0].mxu0
      %v983 = vadd.f32 0.0, %v982
      %v984 = vpop.f32.mrb[0].mxu0
      %v985 = vadd.f32 0.0, %v984
      %v986 = vpop.f32.mrb[0].mxu0
      %v987 = vadd.f32 0.0, %v986
      %v988 = vpop.f32.mrb[0].mxu0
      %v989 = vadd.f32 0.0, %v988
      %990 = vdwg.mxu0
      %991 = vmatprep.subr.bf16.mxu0 0
      %992 = vmatpush1.bf16.msra.mxu0 %v874
      %993 = vmatprep.subr.bf16.mxu0 0
      %994 = vmatpush1.bf16.msra.mxu0 %v877
      %995 = vmatprep.subr.bf16.mxu0 0
      %996 = vmatpush1.bf16.msra.mxu0 %v880
      %997 = vmatprep.subr.bf16.mxu0 0
      %998 = vmatpush1.bf16.msra.mxu0 %v883
      %999 = vmatprep.subr.bf16.mxu0 0
      %1000 = vmatpush1.bf16.msra.mxu0 %v886
      %1001 = vmatprep.subr.bf16.mxu0 0
      %1002 = vmatpush1.bf16.msra.mxu0 %v889
      %1003 = vmatprep.subr.bf16.mxu0 0
      %1004 = vmatpush1.bf16.msra.mxu0 %v892
      %1005 = vmatprep.subr.bf16.mxu0 0
      %1006 = vmatpush1.bf16.msra.mxu0 %v895
      %1007 = vmatprep.subr.bf16.mxu0 0
      %1008 = vmatpush1.bf16.msra.mxu0 %v898
      %1009 = vmatprep.subr.bf16.mxu0 0
      %1010 = vmatpush1.bf16.msra.mxu0 %v901
      %1011 = vmatprep.subr.bf16.mxu0 0
      %1012 = vmatpush1.bf16.msra.mxu0 %v904
      %1013 = vmatprep.subr.bf16.mxu0 0
      %1014 = vmatpush1.bf16.msra.mxu0 %v907
      %1015 = vmatprep.subr.bf16.mxu0 0
      %1016 = vmatpush1.bf16.msra.mxu0 0
      %1017 = vmatprep.subr.bf16.mxu0 0
      %1018 = vmatpush1.bf16.msra.mxu0 0
      %1019 = vmatprep.subr.bf16.mxu0 0
      %1020 = vmatpush1.bf16.msra.mxu0 0
      %1021 = vmatprep.subr.bf16.mxu0 0
      %1022 = vmatpush1.bf16.msra.mxu0 0
      %1023 = vmatprep.mubr.bf16.mxu0 %v946
      %1024 = vmatmul.mubr.bf16.gmra.mrb[0].mxu0 %v702
      %v1025 = vpop.f32.mrb[0].mxu0
      %v1026 = vadd.f32 0.0, %v1025
      %v1027 = vpop.f32.mrb[0].mxu0
      %v1028 = vpop.f32.mrb[0].mxu0
      %v1029 = vadd.f32 0.0, %v1028
      %v1030 = vpop.f32.mrb[0].mxu0
      %1031 = vdwg.mxu0
      %v1032 = vrot.slane %v983, 7
      %v1033 = vrot.slane %v987, 7
      %v1034 = vlaneseq
      %v1035 = vshrl.u32 %v1034, 7
      %vm1036 = vcmp.lt.s32.totalorder %v1035, 1
      %v1037 = vsel %vm1036, %v1032, %v1033
      %v1038 = vsel %vm1036, %v1033, %v1032
      %1040 = vset.pattern.permute.xlu0 0
      %1041 = vperm.xlu0 %1040, %v695
      %v1042 = vpop.permute.xlu0 %1041
      %1045 = vset.pattern.permute.xlu0 0
      %1046 = vperm.xlu0 %1045, %v696
      %v1047 = vpop.permute.xlu0 %1046
      %v1049 = vmul.f32 %v1038, %v1042
      %v1050 = vmul.f32 %v1037, %v1047
      %v1051 = vadd.f32 %v1049, %v985
      %v1052 = vadd.f32 %v1050, %v989
      %v1053 = vrot.slane %v1026, 1
      %v1054 = vrot.slane %v1029, 1
      %vm1055 = vcmp.lt.s32.totalorder %v1035, 7
      %v1056 = vsel %vm1055, %v1053, %v1054
      %v1057 = vsel %vm1055, %v1054, %v1053
      %1059 = vset.pattern.permute.xlu0 0
      %1060 = vperm.xlu0 %1059, %v697
      %v1061 = vpop.permute.xlu0 %1060
      %1064 = vset.pattern.permute.xlu0 0
      %1065 = vperm.xlu0 %1064, %v698
      %v1066 = vpop.permute.xlu0 %1065
      %v1068 = vmul.f32 %v1056, %v1061
      %v1069 = vmul.f32 %v1057, %v1066
      %v1070 = vadd.f32 %v1051, %v1068
      %v1071 = vadd.f32 %v1052, %v1069
      %v1073 = vlaneseq
      %v1074 = vshrl.u32 %v1073, 7
      %v1075 = vsub.s32 0, %v1074
      %v1076 = vrot.slane %v701, %v1075
      %v1078 = vadd.f32 %v1070, %v1076
      %v1079 = vadd.f32 %v1071, %v1076
      %v1080 = vmax.f32 %v1078, 0.0
      %v1081 = vmax.f32 %v1079, 0.0
      %v1082 = vrot.slane %v1080, 1
      %v1083 = vrot.slane %v1081, 1
      %v1084 = vsel %vm1055, %v1082, %v1083
      %v1085 = vsel %vm1055, %v1083, %v1082
      %v1086 = vmax.f32 %v1080, %v1084
      %v1087 = vmax.f32 %v1081, %v1085
      %1088 = vrot.lane.b32.xlu0 %v1086, 120
      %v1089 = vpop.permute.xlu0 %1088
      %1090 = vrot.lane.b32.xlu0 %v1087, 120
      %v1091 = vpop.permute.xlu0 %1090
      %v1092 = vmax.f32 %v1086, %v1089
      %v1093 = vmax.f32 %v1087, %v1091
      %v1094 = vld [vmem:[%s3] sm:$0xf]
      %v1095 = vpack.c.bf16 %v1093, %v1092
      %vm1096 = vcmask 130048
      %v1098 = vsel %vm1096, %v1094, 0
      %1100 = vmatprep.subr.bf16.mxu0 0
      %1101 = vmatpush1.bf16.msra.mxu0 %v1095
      %1102 = vmatprep.subr.bf16.mxu0 0
      %1103 = vmatpush1.bf16.msra.mxu0 0
      %1104 = vmatprep.subr.bf16.mxu0 0
      %1105 = vmatpush1.bf16.msra.mxu0 0
      %1106 = vmatprep.subr.bf16.mxu0 0
      %1107 = vmatpush1.bf16.msra.mxu0 0
      %1108 = vmatprep.subr.bf16.mxu0 0
      %1109 = vmatpush1.bf16.msra.mxu0 0
      %1110 = vmatprep.subr.bf16.mxu0 0
      %1111 = vmatpush1.bf16.msra.mxu0 0
      %1112 = vmatprep.subr.bf16.mxu0 0
      %1113 = vmatpush1.bf16.msra.mxu0 0
      %1114 = vmatprep.subr.bf16.mxu0 0
      %1115 = vmatpush1.bf16.msra.mxu0 0
      %1116 = vmatprep.subr.bf16.mxu0 0
      %1117 = vmatpush1.bf16.msra.mxu0 0
      %1118 = vmatprep.subr.bf16.mxu0 0
      %1119 = vmatpush1.bf16.msra.mxu0 0
      %1120 = vmatprep.subr.bf16.mxu0 0
      %1121 = vmatpush1.bf16.msra.mxu0 0
      %1122 = vmatprep.subr.bf16.mxu0 0
      %1123 = vmatpush1.bf16.msra.mxu0 0
      %1124 = vmatprep.subr.bf16.mxu0 0
      %1125 = vmatpush1.bf16.msra.mxu0 0
      %1126 = vmatprep.subr.bf16.mxu0 0
      %1127 = vmatpush1.bf16.msra.mxu0 0
      %1128 = vmatprep.subr.bf16.mxu0 0
      %1129 = vmatpush1.bf16.msra.mxu0 0
      %1130 = vmatprep.subr.bf16.mxu0 0
      %1131 = vmatpush1.bf16.msra.mxu0 0
      %1132 = vmatprep.mubr.bf16.mxu0 0
      %1133 = vmatmul.mubr.bf16.gmra.mrb[0].mxu0 %v1098
      %v1134 = vpop.f32.mrb[0].mxu0
      %v1135 = vadd.f32 0.0, %v1134
      %v1136 = vpop.f32.mrb[0].mxu0
      %v1137 = vpop.f32.mrb[0].mxu0
      %v1138 = vpop.f32.mrb[0].mxu0
      %1139 = vdwg.mxu0
      %v1140 = vld [vmem:[%s5] sm:$0x1]
      %v1141 = vpack.c.bf16 %v1135, %v1135
      %v1142 = vld [vmem:[%s4] sm:$0xff]
      %v1143 = vld [vmem:[%s4 + $0x8] sm:$0xf]
      %v1144 = vld [vmem:[%s4 + $0xc] sm:$0xff]
      %v1145 = vld [vmem:[%s4 + $0x14] sm:$0xf]
      %v1146 = vld [vmem:[%s4 + $0x18] sm:$0xff]
      %v1147 = vld [vmem:[%s4 + $0x20] sm:$0xf]
      %v1148 = vld [vmem:[%s4 + $0x24] sm:$0xff]
      %v1149 = vld [vmem:[%s4 + $0x2c] sm:$0xf]
      %v1150 = vld [vmem:[%s4 + $0x30] sm:$0xff]
      %v1151 = vld [vmem:[%s4 + $0x38] sm:$0xf]
      %v1152 = vld [vmem:[%s4 + $0x3c] sm:$0xff]
      %v1153 = vld [vmem:[%s4 + $0x44] sm:$0xf]
      %v1154 = vld [vmem:[%s4 + $0x48] sm:$0xff]
      %v1155 = vld [vmem:[%s4 + $0x50] sm:$0xf]
      %v1156 = vld [vmem:[%s4 + $0x54] sm:$0xff]
      %v1157 = vld [vmem:[%s4 + $0x5c] sm:$0xf]
      %v1158 = vld [vmem:[%s4 + $0x60] sm:$0xff]
      %v1159 = vld [vmem:[%s4 + $0x68] sm:$0xf]
      %v1160 = vld [vmem:[%s4 + $0x6c] sm:$0xff]
      %v1161 = vld [vmem:[%s4 + $0x74] sm:$0xf]
      %v1162 = vld [vmem:[%s4 + $0x78] sm:$0xff]
      %v1163 = vld [vmem:[%s4 + $0x80] sm:$0xf]
      %v1164 = vld [vmem:[%s4 + $0x84] sm:$0xff]
      %v1165 = vld [vmem:[%s4 + $0x8c] sm:$0xf]
      %v1166 = vld [vmem:[%s4 + $0x90] sm:$0xff]
      %v1167 = vld [vmem:[%s4 + $0x98] sm:$0xf]
      %v1168 = vld [vmem:[%s4 + $0x9c] sm:$0xff]
      %v1169 = vld [vmem:[%s4 + $0xa4] sm:$0xf]
      %v1170 = vld [vmem:[%s4 + $0xa8] sm:$0xff]
      %v1171 = vld [vmem:[%s4 + $0xb0] sm:$0xf]
      %v1172 = vld [vmem:[%s4 + $0xb4] sm:$0xff]
      %v1173 = vld [vmem:[%s4 + $0xbc] sm:$0xf]
      %v1206 = vunpack.c.l.b16 %v1142
      %v1207 = vunpack.c.h.b16 %v1142
      %v1208 = vunpack.c.l.b16 %v1143
      %v1209 = vunpack.c.l.b16 %v1144
      %v1210 = vunpack.c.h.b16 %v1144
      %v1211 = vunpack.c.l.b16 %v1145
      %v1212 = vunpack.c.l.b16 %v1146
      %v1213 = vunpack.c.h.b16 %v1146
      %v1214 = vunpack.c.l.b16 %v1147
      %v1215 = vunpack.c.l.b16 %v1148
      %v1216 = vunpack.c.h.b16 %v1148
      %v1217 = vunpack.c.l.b16 %v1149
      %v1218 = vunpack.c.l.b16 %v1150
      %v1219 = vunpack.c.h.b16 %v1150
      %v1220 = vunpack.c.l.b16 %v1151
      %v1221 = vunpack.c.l.b16 %v1152
      %v1222 = vunpack.c.h.b16 %v1152
      %v1223 = vunpack.c.l.b16 %v1153
      %v1224 = vunpack.c.l.b16 %v1154
      %v1225 = vunpack.c.h.b16 %v1154
      %v1226 = vunpack.c.l.b16 %v1155
      %v1227 = vunpack.c.l.b16 %v1156
      %v1228 = vunpack.c.h.b16 %v1156
      %v1229 = vunpack.c.l.b16 %v1157
      %v1230 = vunpack.c.l.b16 %v1158
      %v1231 = vunpack.c.h.b16 %v1158
      %v1232 = vunpack.c.l.b16 %v1159
      %v1233 = vunpack.c.l.b16 %v1160
      %v1234 = vunpack.c.h.b16 %v1160
      %v1235 = vunpack.c.l.b16 %v1161
      %v1236 = vunpack.c.l.b16 %v1162
      %v1237 = vunpack.c.h.b16 %v1162
      %v1238 = vunpack.c.l.b16 %v1163
      %v1239 = vunpack.c.l.b16 %v1164
      %v1240 = vunpack.c.h.b16 %v1164
      %v1241 = vunpack.c.l.b16 %v1165
      %v1242 = vunpack.c.l.b16 %v1166
      %v1243 = vunpack.c.h.b16 %v1166
      %v1244 = vunpack.c.l.b16 %v1167
      %v1245 = vunpack.c.l.b16 %v1168
      %v1246 = vunpack.c.h.b16 %v1168
      %v1247 = vunpack.c.l.b16 %v1169
      %v1248 = vunpack.c.l.b16 %v1170
      %v1249 = vunpack.c.h.b16 %v1170
      %v1250 = vunpack.c.l.b16 %v1171
      %v1251 = vunpack.c.l.b16 %v1172
      %v1252 = vunpack.c.h.b16 %v1172
      %v1253 = vunpack.c.l.b16 %v1173
      %v1254 = vpack.c.b16 %v1209, %v1206
      %v1255 = vpack.c.b16 %v1210, %v1207
      %v1256 = vpack.c.b16 %v1211, %v1208
      %v1257 = vpack.c.b16 %v1215, %v1212
      %v1258 = vpack.c.b16 %v1216, %v1213
      %v1259 = vpack.c.b16 %v1217, %v1214
      %v1260 = vpack.c.b16 %v1221, %v1218
      %v1261 = vpack.c.b16 %v1222, %v1219
      %v1262 = vpack.c.b16 %v1223, %v1220
      %v1263 = vpack.c.b16 %v1227, %v1224
      %v1264 = vpack.c.b16 %v1228, %v1225
      %v1265 = vpack.c.b16 %v1229, %v1226
      %v1266 = vpack.c.b16 %v1233, %v1230
      %v1267 = vpack.c.b16 %v1234, %v1231
      %v1268 = vpack.c.b16 %v1235, %v1232
      %v1269 = vpack.c.b16 %v1239, %v1236
      %v1270 = vpack.c.b16 %v1240, %v1237
      %v1271 = vpack.c.b16 %v1241, %v1238
      %v1272 = vpack.c.b16 %v1245, %v1242
      %v1273 = vpack.c.b16 %v1246, %v1243
      %v1274 = vpack.c.b16 %v1247, %v1244
      %v1275 = vpack.c.b16 %v1251, %v1248
      %v1276 = vpack.c.b16 %v1252, %v1249
      %v1277 = vpack.c.b16 %v1253, %v1250
      %1302 = vmatprep.subr.bf16.mxu0 %v1255
      %1303 = vmatpush1.bf16.msra.mxu0 %v1254
      %1304 = vmatprep.subr.bf16.mxu0 %v1258
      %1305 = vmatpush1.bf16.msra.mxu0 %v1257
      %1306 = vmatprep.subr.bf16.mxu0 %v1261
      %1307 = vmatpush1.bf16.msra.mxu0 %v1260
      %1308 = vmatprep.subr.bf16.mxu0 %v1264
      %1309 = vmatpush1.bf16.msra.mxu0 %v1263
      %1310 = vmatprep.subr.bf16.mxu0 %v1267
      %1311 = vmatpush1.bf16.msra.mxu0 %v1266
      %1312 = vmatprep.subr.bf16.mxu0 %v1270
      %1313 = vmatpush1.bf16.msra.mxu0 %v1269
      %1314 = vmatprep.subr.bf16.mxu0 %v1273
      %1315 = vmatpush1.bf16.msra.mxu0 %v1272
      %1316 = vmatprep.subr.bf16.mxu0 %v1276
      %1317 = vmatpush1.bf16.msra.mxu0 %v1275
      %1318 = vmatprep.subr.bf16.mxu0 0
      %1319 = vmatpush1.bf16.msra.mxu0 0
      %1320 = vmatprep.subr.bf16.mxu0 0
      %1321 = vmatpush1.bf16.msra.mxu0 0
      %1322 = vmatprep.subr.bf16.mxu0 0
      %1323 = vmatpush1.bf16.msra.mxu0 0
      %1324 = vmatprep.subr.bf16.mxu0 0
      %1325 = vmatpush1.bf16.msra.mxu0 0
      %1326 = vmatprep.subr.bf16.mxu0 0
      %1327 = vmatpush1.bf16.msra.mxu0 0
      %1328 = vmatprep.subr.bf16.mxu0 0
      %1329 = vmatpush1.bf16.msra.mxu0 0
      %1330 = vmatprep.subr.bf16.mxu0 0
      %1331 = vmatpush1.bf16.msra.mxu0 0
      %1332 = vmatprep.subr.bf16.mxu0 0
      %1333 = vmatpush1.bf16.msra.mxu0 0
      %1334 = vmatprep.mubr.bf16.mxu0 0
      %1335 = vmatmul.mubr.bf16.gmra.mrb[0].mxu0 %v1141
      %v1336 = vpop.f32.mrb[0].mxu0
      %v1337 = vadd.f32 0.0, %v1336
      %v1338 = vpop.f32.mrb[0].mxu0
      %v1339 = vadd.f32 0.0, %v1338
      %v1340 = vpop.f32.mrb[0].mxu0
      %v1341 = vpop.f32.mrb[0].mxu0
      %1342 = vdwg.mxu0
      %1343 = vmatprep.subr.bf16.mxu0 0
      %1344 = vmatpush1.bf16.msra.mxu0 %v1256
      %1345 = vmatprep.subr.bf16.mxu0 0
      %1346 = vmatpush1.bf16.msra.mxu0 %v1259
      %1347 = vmatprep.subr.bf16.mxu0 0
      %1348 = vmatpush1.bf16.msra.mxu0 %v1262
      %1349 = vmatprep.subr.bf16.mxu0 0
      %1350 = vmatpush1.bf16.msra.mxu0 %v1265
      %1351 = vmatprep.subr.bf16.mxu0 0
      %1352 = vmatpush1.bf16.msra.mxu0 %v1268
      %1353 = vmatprep.subr.bf16.mxu0 0
      %1354 = vmatpush1.bf16.msra.mxu0 %v1271
      %1355 = vmatprep.subr.bf16.mxu0 0
      %1356 = vmatpush1.bf16.msra.mxu0 %v1274
      %1357 = vmatprep.subr.bf16.mxu0 0
      %1358 = vmatpush1.bf16.msra.mxu0 %v1277
      %1359 = vmatprep.subr.bf16.mxu0 0
      %1360 = vmatpush1.bf16.msra.mxu0 0
      %1361 = vmatprep.subr.bf16.mxu0 0
      %1362 = vmatpush1.bf16.msra.mxu0 0
      %1363 = vmatprep.subr.bf16.mxu0 0
      %1364 = vmatpush1.bf16.msra.mxu0 0
      %1365 = vmatprep.subr.bf16.mxu0 0
      %1366 = vmatpush1.bf16.msra.mxu0 0
      %1367 = vmatprep.subr.bf16.mxu0 0
      %1368 = vmatpush1.bf16.msra.mxu0 0
      %1369 = vmatprep.subr.bf16.mxu0 0
      %1370 = vmatpush1.bf16.msra.mxu0 0
      %1371 = vmatprep.subr.bf16.mxu0 0
      %1372 = vmatpush1.bf16.msra.mxu0 0
      %1373 = vmatprep.subr.bf16.mxu0 0
      %1374 = vmatpush1.bf16.msra.mxu0 0
      %1375 = vmatprep.mubr.bf16.mxu0 0
      %1376 = vmatmul.mubr.bf16.gmra.mrb[0].mxu0 %v1141
      %v1377 = vpop.f32.mrb[0].mxu0
      %v1378 = vadd.f32 0.0, %v1377
      %v1379 = vpop.f32.mrb[0].mxu0
      %v1380 = vpop.f32.mrb[0].mxu0
      %v1381 = vpop.f32.mrb[0].mxu0
      %1382 = vdwg.mxu0
      %v1383 = vrot.slane %v1337, 7
      %1385 = vset.pattern.permute.xlu0 0
      %1386 = vperm.xlu0 %1385, %v699
      %v1387 = vpop.permute.xlu0 %1386
      %v1389 = vmul.f32 %v1383, %v1387
      %v1390 = vadd.f32 %v1389, %v1339
      %v1391 = vrot.slane %v1378, 1
      %1393 = vset.pattern.permute.xlu0 0
      %1394 = vperm.xlu0 %1393, %v700
      %v1395 = vpop.permute.xlu0 %1394
      %v1397 = vmul.f32 %v1391, %v1395
      %v1398 = vadd.f32 %v1390, %v1397
      %v1400 = vlaneseq
      %v1401 = vshrl.u32 %v1400, 7
      %v1402 = vsub.s32 0, %v1401
      %v1403 = vrot.slane %v1140, %v1402
      %v1405 = vadd.f32 %v1398, %v1403
      %v1406 = vmax.f32 %v1405, 0.0
      %v1407 = vpack.c.bf16 %v1406, %v1406
      %v1408 = vld [vmem:[%s7] sm:$0xff]
      %v1409 = vld [vmem:[%s7 + $0x8] sm:$0xf]
      %v1410 = vld [vmem:[%s7 + $0xc] sm:$0xff]
      %v1411 = vld [vmem:[%s7 + $0x14] sm:$0xf]
      %v1412 = vld [vmem:[%s7 + $0x18] sm:$0xff]
      %v1413 = vld [vmem:[%s7 + $0x20] sm:$0xf]
      %v1414 = vld [vmem:[%s7 + $0x24] sm:$0xff]
      %v1415 = vld [vmem:[%s7 + $0x2c] sm:$0xf]
      %v1416 = vld [vmem:[%s7 + $0x30] sm:$0xff]
      %v1417 = vld [vmem:[%s7 + $0x38] sm:$0xf]
      %v1418 = vld [vmem:[%s7 + $0x3c] sm:$0xff]
      %v1419 = vld [vmem:[%s7 + $0x44] sm:$0xf]
      %v1420 = vld [vmem:[%s7 + $0x48] sm:$0xff]
      %v1421 = vld [vmem:[%s7 + $0x50] sm:$0xf]
      %v1422 = vld [vmem:[%s7 + $0x54] sm:$0xff]
      %v1423 = vld [vmem:[%s7 + $0x5c] sm:$0xf]
      %v1424 = vld [vmem:[%s7 + $0x60] sm:$0xff]
      %v1425 = vld [vmem:[%s7 + $0x68] sm:$0xf]
      %v1426 = vld [vmem:[%s7 + $0x6c] sm:$0xff]
      %v1427 = vld [vmem:[%s7 + $0x74] sm:$0xf]
      %v1428 = vld [vmem:[%s7 + $0x78] sm:$0xff]
      %v1429 = vld [vmem:[%s7 + $0x80] sm:$0xf]
      %v1430 = vld [vmem:[%s7 + $0x84] sm:$0xff]
      %v1431 = vld [vmem:[%s7 + $0x8c] sm:$0xf]
      %v1432 = vld [vmem:[%s7 + $0x90] sm:$0xff]
      %v1433 = vld [vmem:[%s7 + $0x98] sm:$0xf]
      %v1434 = vld [vmem:[%s7 + $0x9c] sm:$0xff]
      %v1435 = vld [vmem:[%s7 + $0xa4] sm:$0xf]
      %v1436 = vld [vmem:[%s7 + $0xa8] sm:$0xff]
      %v1437 = vld [vmem:[%s7 + $0xb0] sm:$0xf]
      %v1438 = vld [vmem:[%s7 + $0xb4] sm:$0xff]
      %v1439 = vld [vmem:[%s7 + $0xbc] sm:$0xf]
      %v1472 = vunpack.c.l.b16 %v1408
      %v1473 = vunpack.c.h.b16 %v1408
      %v1474 = vunpack.c.l.b16 %v1409
      %v1475 = vunpack.c.l.b16 %v1410
      %v1476 = vunpack.c.h.b16 %v1410
      %v1477 = vunpack.c.l.b16 %v1411
      %v1478 = vunpack.c.l.b16 %v1412
      %v1479 = vunpack.c.h.b16 %v1412
      %v1480 = vunpack.c.l.b16 %v1413
      %v1481 = vunpack.c.l.b16 %v1414
      %v1482 = vunpack.c.h.b16 %v1414
      %v1483 = vunpack.c.l.b16 %v1415
      %v1484 = vunpack.c.l.b16 %v1416
      %v1485 = vunpack.c.h.b16 %v1416
      %v1486 = vunpack.c.l.b16 %v1417
      %v1487 = vunpack.c.l.b16 %v1418
      %v1488 = vunpack.c.h.b16 %v1418
      %v1489 = vunpack.c.l.b16 %v1419
      %v1490 = vunpack.c.l.b16 %v1420
      %v1491 = vunpack.c.h.b16 %v1420
      %v1492 = vunpack.c.l.b16 %v1421
      %v1493 = vunpack.c.l.b16 %v1422
      %v1494 = vunpack.c.h.b16 %v1422
      %v1495 = vunpack.c.l.b16 %v1423
      %v1496 = vunpack.c.l.b16 %v1424
      %v1497 = vunpack.c.h.b16 %v1424
      %v1498 = vunpack.c.l.b16 %v1425
      %v1499 = vunpack.c.l.b16 %v1426
      %v1500 = vunpack.c.h.b16 %v1426
      %v1501 = vunpack.c.l.b16 %v1427
      %v1502 = vunpack.c.l.b16 %v1428
      %v1503 = vunpack.c.h.b16 %v1428
      %v1504 = vunpack.c.l.b16 %v1429
      %v1505 = vunpack.c.l.b16 %v1430
      %v1506 = vunpack.c.h.b16 %v1430
      %v1507 = vunpack.c.l.b16 %v1431
      %v1508 = vunpack.c.l.b16 %v1432
      %v1509 = vunpack.c.h.b16 %v1432
      %v1510 = vunpack.c.l.b16 %v1433
      %v1511 = vunpack.c.l.b16 %v1434
      %v1512 = vunpack.c.h.b16 %v1434
      %v1513 = vunpack.c.l.b16 %v1435
      %v1514 = vunpack.c.l.b16 %v1436
      %v1515 = vunpack.c.h.b16 %v1436
      %v1516 = vunpack.c.l.b16 %v1437
      %v1517 = vunpack.c.l.b16 %v1438
      %v1518 = vunpack.c.h.b16 %v1438
      %v1519 = vunpack.c.l.b16 %v1439
      %v1520 = vpack.c.b16 %v1475, %v1472
      %v1521 = vpack.c.b16 %v1476, %v1473
      %v1522 = vpack.c.b16 %v1477, %v1474
      %v1523 = vpack.c.b16 %v1481, %v1478
      %v1524 = vpack.c.b16 %v1482, %v1479
      %v1525 = vpack.c.b16 %v1483, %v1480
      %v1526 = vpack.c.b16 %v1487, %v1484
      %v1527 = vpack.c.b16 %v1488, %v1485
      %v1528 = vpack.c.b16 %v1489, %v1486
      %v1529 = vpack.c.b16 %v1493, %v1490
      %v1530 = vpack.c.b16 %v1494, %v1491
      %v1531 = vpack.c.b16 %v1495, %v1492
      %v1532 = vpack.c.b16 %v1499, %v1496
      %v1533 = vpack.c.b16 %v1500, %v1497
      %v1534 = vpack.c.b16 %v1501, %v1498
      %v1535 = vpack.c.b16 %v1505, %v1502
      %v1536 = vpack.c.b16 %v1506, %v1503
      %v1537 = vpack.c.b16 %v1507, %v1504
      %v1538 = vpack.c.b16 %v1511, %v1508
      %v1539 = vpack.c.b16 %v1512, %v1509
      %v1540 = vpack.c.b16 %v1513, %v1510
      %v1541 = vpack.c.b16 %v1517, %v1514
      %v1542 = vpack.c.b16 %v1518, %v1515
      %v1543 = vpack.c.b16 %v1519, %v1516
      %1568 = vmatprep.subr.bf16.mxu0 %v1521
      %1569 = vmatpush1.bf16.msra.mxu0 %v1520
      %1570 = vmatprep.subr.bf16.mxu0 %v1524
      %1571 = vmatpush1.bf16.msra.mxu0 %v1523
      %1572 = vmatprep.subr.bf16.mxu0 %v1527
      %1573 = vmatpush1.bf16.msra.mxu0 %v1526
      %1574 = vmatprep.subr.bf16.mxu0 %v1530
      %1575 = vmatpush1.bf16.msra.mxu0 %v1529
      %1576 = vmatprep.subr.bf16.mxu0 %v1533
      %1577 = vmatpush1.bf16.msra.mxu0 %v1532
      %1578 = vmatprep.subr.bf16.mxu0 %v1536
      %1579 = vmatpush1.bf16.msra.mxu0 %v1535
      %1580 = vmatprep.subr.bf16.mxu0 %v1539
      %1581 = vmatpush1.bf16.msra.mxu0 %v1538
      %1582 = vmatprep.subr.bf16.mxu0 %v1542
      %1583 = vmatpush1.bf16.msra.mxu0 %v1541
      %1584 = vmatprep.subr.bf16.mxu0 0
      %1585 = vmatpush1.bf16.msra.mxu0 0
      %1586 = vmatprep.subr.bf16.mxu0 0
      %1587 = vmatpush1.bf16.msra.mxu0 0
      %1588 = vmatprep.subr.bf16.mxu0 0
      %1589 = vmatpush1.bf16.msra.mxu0 0
      %1590 = vmatprep.subr.bf16.mxu0 0
      %1591 = vmatpush1.bf16.msra.mxu0 0
      %1592 = vmatprep.subr.bf16.mxu0 0
      %1593 = vmatpush1.bf16.msra.mxu0 0
      %1594 = vmatprep.subr.bf16.mxu0 0
      %1595 = vmatpush1.bf16.msra.mxu0 0
      %1596 = vmatprep.subr.bf16.mxu0 0
      %1597 = vmatpush1.bf16.msra.mxu0 0
      %1598 = vmatprep.subr.bf16.mxu0 0
      %1599 = vmatpush1.bf16.msra.mxu0 0
      %1600 = vmatprep.mubr.bf16.mxu0 0
      %1601 = vmatmul.mubr.bf16.gmra.mrb[0].mxu0 %v1407
      %v1602 = vpop.f32.mrb[0].mxu0
      %v1603 = vadd.f32 0.0, %v1602
      %v1604 = vpop.f32.mrb[0].mxu0
      %v1605 = vadd.f32 0.0, %v1604
      %v1606 = vpop.f32.mrb[0].mxu0
      %v1607 = vpop.f32.mrb[0].mxu0
      %1608 = vdwg.mxu0
      %1609 = vmatprep.subr.bf16.mxu0 0
      %1610 = vmatpush1.bf16.msra.mxu0 %v1522
      %1611 = vmatprep.subr.bf16.mxu0 0
      %1612 = vmatpush1.bf16.msra.mxu0 %v1525
      %1613 = vmatprep.subr.bf16.mxu0 0
      %1614 = vmatpush1.bf16.msra.mxu0 %v1528
      %1615 = vmatprep.subr.bf16.mxu0 0
      %1616 = vmatpush1.bf16.msra.mxu0 %v1531
      %1617 = vmatprep.subr.bf16.mxu0 0
      %1618 = vmatpush1.bf16.msra.mxu0 %v1534
      %1619 = vmatprep.subr.bf16.mxu0 0
      %1620 = vmatpush1.bf16.msra.mxu0 %v1537
      %1621 = vmatprep.subr.bf16.mxu0 0
      %1622 = vmatpush1.bf16.msra.mxu0 %v1540
      %1623 = vmatprep.subr.bf16.mxu0 0
      %1624 = vmatpush1.bf16.msra.mxu0 %v1543
      %1625 = vmatprep.subr.bf16.mxu0 0
      %1626 = vmatpush1.bf16.msra.mxu0 0
      %1627 = vmatprep.subr.bf16.mxu0 0
      %1628 = vmatpush1.bf16.msra.mxu0 0
      %1629 = vmatprep.subr.bf16.mxu0 0
      %1630 = vmatpush1.bf16.msra.mxu0 0
      %1631 = vmatprep.subr.bf16.mxu0 0
      %1632 = vmatpush1.bf16.msra.mxu0 0
      %1633 = vmatprep.subr.bf16.mxu0 0
      %1634 = vmatpush1.bf16.msra.mxu0 0
      %1635 = vmatprep.subr.bf16.mxu0 0
      %1636 = vmatpush1.bf16.msra.mxu0 0
      %1637 = vmatprep.subr.bf16.mxu0 0
      %1638 = vmatpush1.bf16.msra.mxu0 0
      %1639 = vmatprep.subr.bf16.mxu0 0
      %1640 = vmatpush1.bf16.msra.mxu0 0
      %1641 = vmatprep.mubr.bf16.mxu0 0
      %1642 = vmatmul.mubr.bf16.gmra.mrb[0].mxu0 %v1407
      %v1643 = vpop.f32.mrb[0].mxu0
      %v1644 = vadd.f32 0.0, %v1643
      %v1645 = vpop.f32.mrb[0].mxu0
      %v1646 = vpop.f32.mrb[0].mxu0
      %v1647 = vpop.f32.mrb[0].mxu0
      %1648 = vdwg.mxu0
      %v1649 = vld [vmem:[%s8] sm:$0xf]
      %v1650 = vld [vmem:[%s8 + $0x4] sm:$0xf]
      %v1651 = vpack.c.bf16 %v1603, %v1603
      %v1652 = vpack.c.bf16 %v1605, %v1605
      %v1653 = vpack.c.bf16 %v1644, %v1644
      %v1656 = vunpack.c.l.b16 %v1649
      %v1657 = vunpack.c.l.b16 %v1650
      %v1658 = vpack.c.b16 %v1657, %v1656
      %vm1659 = vcmask 64512
      %v1661 = vsel %vm1659, %v1658, 0
      %vm1663 = vcmask 1043456
      %v1665 = vsel %vm1663, %v1651, 0
      %v1668 = vsel %vm1663, %v1652, 0
      %v1671 = vsel %vm1663, %v1653, 0
      %1673 = vmatprep.subr.bf16.mxu0 %v1668
      %1674 = vmatpush1.bf16.msra.mxu0 %v1665
      %1675 = vmatprep.subr.bf16.mxu0 0
      %1676 = vmatpush1.bf16.msra.mxu0 0
      %1677 = vmatprep.subr.bf16.mxu0 0
      %1678 = vmatpush1.bf16.msra.mxu0 0
      %1679 = vmatprep.subr.bf16.mxu0 0
      %1680 = vmatpush1.bf16.msra.mxu0 0
      %1681 = vmatprep.subr.bf16.mxu0 0
      %1682 = vmatpush1.bf16.msra.mxu0 0
      %1683 = vmatprep.subr.bf16.mxu0 0
      %1684 = vmatpush1.bf16.msra.mxu0 0
      %1685 = vmatprep.subr.bf16.mxu0 0
      %1686 = vmatpush1.bf16.msra.mxu0 0
      %1687 = vmatprep.subr.bf16.mxu0 0
      %1688 = vmatpush1.bf16.msra.mxu0 0
      %1689 = vmatprep.subr.bf16.mxu0 0
      %1690 = vmatpush1.bf16.msra.mxu0 0
      %1691 = vmatprep.subr.bf16.mxu0 0
      %1692 = vmatpush1.bf16.msra.mxu0 0
      %1693 = vmatprep.subr.bf16.mxu0 0
      %1694 = vmatpush1.bf16.msra.mxu0 0
      %1695 = vmatprep.subr.bf16.mxu0 0
      %1696 = vmatpush1.bf16.msra.mxu0 0
      %1697 = vmatprep.subr.bf16.mxu0 0
      %1698 = vmatpush1.bf16.msra.mxu0 0
      %1699 = vmatprep.subr.bf16.mxu0 0
      %1700 = vmatpush1.bf16.msra.mxu0 0
      %1701 = vmatprep.subr.bf16.mxu0 0
      %1702 = vmatpush1.bf16.msra.mxu0 0
      %1703 = vmatprep.subr.bf16.mxu0 0
      %1704 = vmatpush1.bf16.msra.mxu0 0
      %1705 = vmatprep.mubr.bf16.mxu0 0
      %1706 = vmatmul.mubr.bf16.gmra.mrb[0].mxu0 %v1661
      %v1707 = vpop.f32.mrb[0].mxu0
      %v1708 = vadd.f32 0.0, %v1707
      %v1709 = vpop.f32.mrb[0].mxu0
      %v1710 = vadd.f32 0.0, %v1709
      %v1711 = vpop.f32.mrb[0].mxu0
      %v1712 = vadd.f32 0.0, %v1711
      %v1713 = vpop.f32.mrb[0].mxu0
      %v1714 = vadd.f32 0.0, %v1713
      %1715 = vdwg.mxu0
      %1716 = vmatprep.subr.bf16.mxu0 0
      %1717 = vmatpush1.bf16.msra.mxu0 %v1671
      %1718 = vmatprep.subr.bf16.mxu0 0
      %1719 = vmatpush1.bf16.msra.mxu0 0
      %1720 = vmatprep.subr.bf16.mxu0 0
      %1721 = vmatpush1.bf16.msra.mxu0 0
      %1722 = vmatprep.subr.bf16.mxu0 0
      %1723 = vmatpush1.bf16.msra.mxu0 0
      %1724 = vmatprep.subr.bf16.mxu0 0
      %1725 = vmatpush1.bf16.msra.mxu0 0
      %1726 = vmatprep.subr.bf16.mxu0 0
      %1727 = vmatpush1.bf16.msra.mxu0 0
      %1728 = vmatprep.subr.bf16.mxu0 0
      %1729 = vmatpush1.bf16.msra.mxu0 0
      %1730 = vmatprep.subr.bf16.mxu0 0
      %1731 = vmatpush1.bf16.msra.mxu0 0
      %1732 = vmatprep.subr.bf16.mxu0 0
      %1733 = vmatpush1.bf16.msra.mxu0 0
      %1734 = vmatprep.subr.bf16.mxu0 0
      %1735 = vmatpush1.bf16.msra.mxu0 0
      %1736 = vmatprep.subr.bf16.mxu0 0
      %1737 = vmatpush1.bf16.msra.mxu0 0
      %1738 = vmatprep.subr.bf16.mxu0 0
      %1739 = vmatpush1.bf16.msra.mxu0 0
      %1740 = vmatprep.subr.bf16.mxu0 0
      %1741 = vmatpush1.bf16.msra.mxu0 0
      %1742 = vmatprep.subr.bf16.mxu0 0
      %1743 = vmatpush1.bf16.msra.mxu0 0
      %1744 = vmatprep.subr.bf16.mxu0 0
      %1745 = vmatpush1.bf16.msra.mxu0 0
      %1746 = vmatprep.subr.bf16.mxu0 0
      %1747 = vmatpush1.bf16.msra.mxu0 0
      %1748 = vmatprep.mubr.bf16.mxu0 0
      %1749 = vmatmul.mubr.bf16.gmra.mrb[0].mxu0 %v1661
      %v1750 = vpop.f32.mrb[0].mxu0
      %v1751 = vadd.f32 0.0, %v1750
      %v1752 = vpop.f32.mrb[0].mxu0
      %v1753 = vpop.f32.mrb[0].mxu0
      %v1754 = vadd.f32 0.0, %v1753
      %v1755 = vpop.f32.mrb[0].mxu0
      %1756 = vdwg.mxu0
      %v1757 = vld [vmem:[%s9] sm:$0x1]
      %v1758 = vpack.c.bf16 %v1081, %v1080
      %v1759 = vld [vmem:[%s6] sm:$0xff]
      %v1760 = vld [vmem:[%s6 + $0x8] sm:$0xf]
      %v1761 = vld [vmem:[%s6 + $0xc] sm:$0xff]
      %v1762 = vld [vmem:[%s6 + $0x14] sm:$0xf]
      %v1763 = vld [vmem:[%s6 + $0x18] sm:$0xff]
      %v1764 = vld [vmem:[%s6 + $0x20] sm:$0xf]
      %v1765 = vld [vmem:[%s6 + $0x24] sm:$0xff]
      %v1766 = vld [vmem:[%s6 + $0x2c] sm:$0xf]
      %v1767 = vld [vmem:[%s6 + $0x30] sm:$0xff]
      %v1768 = vld [vmem:[%s6 + $0x38] sm:$0xf]
      %v1769 = vld [vmem:[%s6 + $0x3c] sm:$0xff]
      %v1770 = vld [vmem:[%s6 + $0x44] sm:$0xf]
      %v1771 = vld [vmem:[%s6 + $0x48] sm:$0xff]
      %v1772 = vld [vmem:[%s6 + $0x50] sm:$0xf]
      %v1773 = vld [vmem:[%s6 + $0x54] sm:$0xff]
      %v1774 = vld [vmem:[%s6 + $0x5c] sm:$0xf]
      %v1775 = vld [vmem:[%s6 + $0x60] sm:$0xff]
      %v1776 = vld [vmem:[%s6 + $0x68] sm:$0xf]
      %v1777 = vld [vmem:[%s6 + $0x6c] sm:$0xff]
      %v1778 = vld [vmem:[%s6 + $0x74] sm:$0xf]
      %v1779 = vld [vmem:[%s6 + $0x78] sm:$0xff]
      %v1780 = vld [vmem:[%s6 + $0x80] sm:$0xf]
      %v1781 = vld [vmem:[%s6 + $0x84] sm:$0xff]
      %v1782 = vld [vmem:[%s6 + $0x8c] sm:$0xf]
      %v1783 = vld [vmem:[%s6 + $0x90] sm:$0xff]
      %v1784 = vld [vmem:[%s6 + $0x98] sm:$0xf]
      %v1785 = vld [vmem:[%s6 + $0x9c] sm:$0xff]
      %v1786 = vld [vmem:[%s6 + $0xa4] sm:$0xf]
      %v1787 = vld [vmem:[%s6 + $0xa8] sm:$0xff]
      %v1788 = vld [vmem:[%s6 + $0xb0] sm:$0xf]
      %v1789 = vld [vmem:[%s6 + $0xb4] sm:$0xff]
      %v1790 = vld [vmem:[%s6 + $0xbc] sm:$0xf]
      %v1823 = vunpack.c.l.b16 %v1759
      %v1824 = vunpack.c.h.b16 %v1759
      %v1825 = vunpack.c.l.b16 %v1760
      %v1826 = vunpack.c.l.b16 %v1761
      %v1827 = vunpack.c.h.b16 %v1761
      %v1828 = vunpack.c.l.b16 %v1762
      %v1829 = vunpack.c.l.b16 %v1763
      %v1830 = vunpack.c.h.b16 %v1763
      %v1831 = vunpack.c.l.b16 %v1764
      %v1832 = vunpack.c.l.b16 %v1765
      %v1833 = vunpack.c.h.b16 %v1765
      %v1834 = vunpack.c.l.b16 %v1766
      %v1835 = vunpack.c.l.b16 %v1767
      %v1836 = vunpack.c.h.b16 %v1767
      %v1837 = vunpack.c.l.b16 %v1768
      %v1838 = vunpack.c.l.b16 %v1769
      %v1839 = vunpack.c.h.b16 %v1769
      %v1840 = vunpack.c.l.b16 %v1770
      %v1841 = vunpack.c.l.b16 %v1771
      %v1842 = vunpack.c.h.b16 %v1771
      %v1843 = vunpack.c.l.b16 %v1772
      %v1844 = vunpack.c.l.b16 %v1773
      %v1845 = vunpack.c.h.b16 %v1773
      %v1846 = vunpack.c.l.b16 %v1774
      %v1847 = vunpack.c.l.b16 %v1775
      %v1848 = vunpack.c.h.b16 %v1775
      %v1849 = vunpack.c.l.b16 %v1776
      %v1850 = vunpack.c.l.b16 %v1777
      %v1851 = vunpack.c.h.b16 %v1777
      %v1852 = vunpack.c.l.b16 %v1778
      %v1853 = vunpack.c.l.b16 %v1779
      %v1854 = vunpack.c.h.b16 %v1779
      %v1855 = vunpack.c.l.b16 %v1780
      %v1856 = vunpack.c.l.b16 %v1781
      %v1857 = vunpack.c.h.b16 %v1781
      %v1858 = vunpack.c.l.b16 %v1782
      %v1859 = vunpack.c.l.b16 %v1783
      %v1860 = vunpack.c.h.b16 %v1783
      %v1861 = vunpack.c.l.b16 %v1784
      %v1862 = vunpack.c.l.b16 %v1785
      %v1863 = vunpack.c.h.b16 %v1785
      %v1864 = vunpack.c.l.b16 %v1786
      %v1865 = vunpack.c.l.b16 %v1787
      %v1866 = vunpack.c.h.b16 %v1787
      %v1867 = vunpack.c.l.b16 %v1788
      %v1868 = vunpack.c.l.b16 %v1789
      %v1869 = vunpack.c.h.b16 %v1789
      %v1870 = vunpack.c.l.b16 %v1790
      %v1871 = vpack.c.b16 %v1826, %v1823
      %v1872 = vpack.c.b16 %v1827, %v1824
      %v1873 = vpack.c.b16 %v1828, %v1825
      %v1874 = vpack.c.b16 %v1832, %v1829
      %v1875 = vpack.c.b16 %v1833, %v1830
      %v1876 = vpack.c.b16 %v1834, %v1831
      %v1877 = vpack.c.b16 %v1838, %v1835
      %v1878 = vpack.c.b16 %v1839, %v1836
      %v1879 = vpack.c.b16 %v1840, %v1837
      %v1880 = vpack.c.b16 %v1844, %v1841
      %v1881 = vpack.c.b16 %v1845, %v1842
      %v1882 = vpack.c.b16 %v1846, %v1843
      %v1883 = vpack.c.b16 %v1850, %v1847
      %v1884 = vpack.c.b16 %v1851, %v1848
      %v1885 = vpack.c.b16 %v1852, %v1849
      %v1886 = vpack.c.b16 %v1856, %v1853
      %v1887 = vpack.c.b16 %v1857, %v1854
      %v1888 = vpack.c.b16 %v1858, %v1855
      %v1889 = vpack.c.b16 %v1862, %v1859
      %v1890 = vpack.c.b16 %v1863, %v1860
      %v1891 = vpack.c.b16 %v1864, %v1861
      %v1892 = vpack.c.b16 %v1868, %v1865
      %v1893 = vpack.c.b16 %v1869, %v1866
      %v1894 = vpack.c.b16 %v1870, %v1867
      %1919 = vmatprep.subr.bf16.mxu0 %v1872
      %1920 = vmatpush1.bf16.msra.mxu0 %v1871
      %1921 = vmatprep.subr.bf16.mxu0 %v1875
      %1922 = vmatpush1.bf16.msra.mxu0 %v1874
      %1923 = vmatprep.subr.bf16.mxu0 %v1878
      %1924 = vmatpush1.bf16.msra.mxu0 %v1877
      %1925 = vmatprep.subr.bf16.mxu0 %v1881
      %1926 = vmatpush1.bf16.msra.mxu0 %v1880
      %1927 = vmatprep.subr.bf16.mxu0 %v1884
      %1928 = vmatpush1.bf16.msra.mxu0 %v1883
      %1929 = vmatprep.subr.bf16.mxu0 %v1887
      %1930 = vmatpush1.bf16.msra.mxu0 %v1886
      %1931 = vmatprep.subr.bf16.mxu0 %v1890
      %1932 = vmatpush1.bf16.msra.mxu0 %v1889
      %1933 = vmatprep.subr.bf16.mxu0 %v1893
      %1934 = vmatpush1.bf16.msra.mxu0 %v1892
      %1935 = vmatprep.subr.bf16.mxu0 0
      %1936 = vmatpush1.bf16.msra.mxu0 0
      %1937 = vmatprep.subr.bf16.mxu0 0
      %1938 = vmatpush1.bf16.msra.mxu0 0
      %1939 = vmatprep.subr.bf16.mxu0 0
      %1940 = vmatpush1.bf16.msra.mxu0 0
      %1941 = vmatprep.subr.bf16.mxu0 0
      %1942 = vmatpush1.bf16.msra.mxu0 0
      %1943 = vmatprep.subr.bf16.mxu0 0
      %1944 = vmatpush1.bf16.msra.mxu0 0
      %1945 = vmatprep.subr.bf16.mxu0 0
      %1946 = vmatpush1.bf16.msra.mxu0 0
      %1947 = vmatprep.subr.bf16.mxu0 0
      %1948 = vmatpush1.bf16.msra.mxu0 0
      %1949 = vmatprep.subr.bf16.mxu0 0
      %1950 = vmatpush1.bf16.msra.mxu0 0
      %1951 = vmatprep.mubr.bf16.mxu0 0
      %1952 = vmatmul.mubr.bf16.gmra.mrb[0].mxu0 %v1758
      %v1953 = vpop.f32.mrb[0].mxu0
      %v1954 = vadd.f32 %v1708, %v1953
      %v1955 = vpop.f32.mrb[0].mxu0
      %v1956 = vadd.f32 %v1710, %v1955
      %v1957 = vpop.f32.mrb[0].mxu0
      %v1958 = vadd.f32 %v1712, %v1957
      %v1959 = vpop.f32.mrb[0].mxu0
      %v1960 = vadd.f32 %v1714, %v1959
      %1961 = vdwg.mxu0
      %1962 = vmatprep.subr.bf16.mxu0 0
      %1963 = vmatpush1.bf16.msra.mxu0 %v1873
      %1964 = vmatprep.subr.bf16.mxu0 0
      %1965 = vmatpush1.bf16.msra.mxu0 %v1876
      %1966 = vmatprep.subr.bf16.mxu0 0
      %1967 = vmatpush1.bf16.msra.mxu0 %v1879
      %1968 = vmatprep.subr.bf16.mxu0 0
      %1969 = vmatpush1.bf16.msra.mxu0 %v1882
      %1970 = vmatprep.subr.bf16.mxu0 0
      %1971 = vmatpush1.bf16.msra.mxu0 %v1885
      %1972 = vmatprep.subr.bf16.mxu0 0
      %1973 = vmatpush1.bf16.msra.mxu0 %v1888
      %1974 = vmatprep.subr.bf16.mxu0 0
      %1975 = vmatpush1.bf16.msra.mxu0 %v1891
      %1976 = vmatprep.subr.bf16.mxu0 0
      %1977 = vmatpush1.bf16.msra.mxu0 %v1894
      %1978 = vmatprep.subr.bf16.mxu0 0
      %1979 = vmatpush1.bf16.msra.mxu0 0
      %1980 = vmatprep.subr.bf16.mxu0 0
      %1981 = vmatpush1.bf16.msra.mxu0 0
      %1982 = vmatprep.subr.bf16.mxu0 0
      %1983 = vmatpush1.bf16.msra.mxu0 0
      %1984 = vmatprep.subr.bf16.mxu0 0
      %1985 = vmatpush1.bf16.msra.mxu0 0
      %1986 = vmatprep.subr.bf16.mxu0 0
      %1987 = vmatpush1.bf16.msra.mxu0 0
      %1988 = vmatprep.subr.bf16.mxu0 0
      %1989 = vmatpush1.bf16.msra.mxu0 0
      %1990 = vmatprep.subr.bf16.mxu0 0
      %1991 = vmatpush1.bf16.msra.mxu0 0
      %1992 = vmatprep.subr.bf16.mxu0 0
      %1993 = vmatpush1.bf16.msra.mxu0 0
      %1994 = vmatprep.mubr.bf16.mxu0 0
      %1995 = vmatmul.mubr.bf16.gmra.mrb[0].mxu0 %v1758
      %v1996 = vpop.f32.mrb[0].mxu0
      %v1997 = vadd.f32 %v1751, %v1996
      %v1998 = vpop.f32.mrb[0].mxu0
      %v1999 = vpop.f32.mrb[0].mxu0
      %v2000 = vadd.f32 %v1754, %v1999
      %v2001 = vpop.f32.mrb[0].mxu0
      %2002 = vdwg.mxu0
      %v2003 = vrot.slane %v1954, 7
      %v2004 = vrot.slane %v1958, 7
      %v2005 = vsel %vm1036, %v2003, %v2004
      %v2006 = vsel %vm1036, %v2004, %v2003
      %v2007 = vmul.f32 %v2006, %v1042
      %v2008 = vmul.f32 %v2005, %v1047
      %v2009 = vadd.f32 %v2007, %v1956
      %v2010 = vadd.f32 %v2008, %v1960
      %v2011 = vrot.slane %v1997, 1
      %v2012 = vrot.slane %v2000, 1
      %v2013 = vsel %vm1055, %v2011, %v2012
      %v2014 = vsel %vm1055, %v2012, %v2011
      %v2015 = vmul.f32 %v2013, %v1061
      %v2016 = vmul.f32 %v2014, %v1066
      %v2017 = vadd.f32 %v2009, %v2015
      %v2018 = vadd.f32 %v2010, %v2016
      %v2020 = vlaneseq
      %v2021 = vshrl.u32 %v2020, 7
      %v2022 = vsub.s32 0, %v2021
      %v2023 = vrot.slane %v1757, %v2022
      %v2025 = vadd.f32 %v2017, %v2023
      %v2026 = vadd.f32 %v2018, %v2023
      %v2027 = vmax.f32 %v2025, 0.0
      %v2028 = vmax.f32 %v2026, 0.0
      %v2029 = vadd.f32 %v2027, %v2028
      %v2030 = vrot.slane %v2029, 4
      %v2031 = vadd.f32 %v2029, %v2030
      %v2032 = vrot.slane %v2031, 2
      %v2033 = vadd.f32 %v2031, %v2032
      %v2034 = vrot.slane %v2033, 1
      %v2035 = vadd.f32 %v2033, %v2034
      %v2036 = vpack.c.bf16 %v2035, %v2035
      %v2037 = vld [vmem:[%s15] sm:$0xf]
      %v2038 = vld [vmem:[%s15 + $0x4] sm:$0xf]
      %v2039 = vld [vmem:[%s15 + $0x8] sm:$0xf]
      %v2040 = vld [vmem:[%s15 + $0xc] sm:$0xf]
      %v2041 = vld [vmem:[%s15 + $0x10] sm:$0xf]
      %v2042 = vld [vmem:[%s15 + $0x14] sm:$0xf]
      %v2043 = vld [vmem:[%s15 + $0x18] sm:$0xf]
      %v2044 = vld [vmem:[%s15 + $0x1c] sm:$0xf]
      %v2045 = vld [vmem:[%s15 + $0x20] sm:$0xf]
      %v2046 = vld [vmem:[%s15 + $0x24] sm:$0xf]
      %v2047 = vld [vmem:[%s15 + $0x28] sm:$0xf]
      %v2048 = vld [vmem:[%s15 + $0x2c] sm:$0xf]
      %v2049 = vld [vmem:[%s15 + $0x30] sm:$0xf]
      %v2050 = vld [vmem:[%s15 + $0x34] sm:$0xf]
      %v2051 = vld [vmem:[%s15 + $0x38] sm:$0xf]
      %v2052 = vld [vmem:[%s15 + $0x3c] sm:$0xf]
      %v2069 = vunpack.c.l.b16 %v2037
      %v2070 = vunpack.c.l.b16 %v2038
      %v2071 = vunpack.c.l.b16 %v2039
      %v2072 = vunpack.c.l.b16 %v2040
      %v2073 = vunpack.c.l.b16 %v2041
      %v2074 = vunpack.c.l.b16 %v2042
      %v2075 = vunpack.c.l.b16 %v2043
      %v2076 = vunpack.c.l.b16 %v2044
      %v2077 = vunpack.c.l.b16 %v2045
      %v2078 = vunpack.c.l.b16 %v2046
      %v2079 = vunpack.c.l.b16 %v2047
      %v2080 = vunpack.c.l.b16 %v2048
      %v2081 = vunpack.c.l.b16 %v2049
      %v2082 = vunpack.c.l.b16 %v2050
      %v2083 = vunpack.c.l.b16 %v2051
      %v2084 = vunpack.c.l.b16 %v2052
      %v2085 = vpack.c.b16 %v2070, %v2069
      %v2086 = vpack.c.b16 %v2072, %v2071
      %v2087 = vpack.c.b16 %v2074, %v2073
      %v2088 = vpack.c.b16 %v2076, %v2075
      %v2089 = vpack.c.b16 %v2078, %v2077
      %v2090 = vpack.c.b16 %v2080, %v2079
      %v2091 = vpack.c.b16 %v2082, %v2081
      %v2092 = vpack.c.b16 %v2084, %v2083
      %2101 = vmatprep.subr.bf16.mxu0 0
      %2102 = vmatpush1.bf16.msra.mxu0 %v2085
      %2103 = vmatprep.subr.bf16.mxu0 0
      %2104 = vmatpush1.bf16.msra.mxu0 %v2086
      %2105 = vmatprep.subr.bf16.mxu0 0
      %2106 = vmatpush1.bf16.msra.mxu0 %v2087
      %2107 = vmatprep.subr.bf16.mxu0 0
      %2108 = vmatpush1.bf16.msra.mxu0 %v2088
      %2109 = vmatprep.subr.bf16.mxu0 0
      %2110 = vmatpush1.bf16.msra.mxu0 %v2089
      %2111 = vmatprep.subr.bf16.mxu0 0
      %2112 = vmatpush1.bf16.msra.mxu0 %v2090
      %2113 = vmatprep.subr.bf16.mxu0 0
      %2114 = vmatpush1.bf16.msra.mxu0 %v2091
      %2115 = vmatprep.subr.bf16.mxu0 0
      %2116 = vmatpush1.bf16.msra.mxu0 %v2092
      %2117 = vmatprep.subr.bf16.mxu0 0
      %2118 = vmatpush1.bf16.msra.mxu0 0
      %2119 = vmatprep.subr.bf16.mxu0 0
      %2120 = vmatpush1.bf16.msra.mxu0 0
      %2121 = vmatprep.subr.bf16.mxu0 0
      %2122 = vmatpush1.bf16.msra.mxu0 0
      %2123 = vmatprep.subr.bf16.mxu0 0
      %2124 = vmatpush1.bf16.msra.mxu0 0
      %2125 = vmatprep.subr.bf16.mxu0 0
      %2126 = vmatpush1.bf16.msra.mxu0 0
      %2127 = vmatprep.subr.bf16.mxu0 0
      %2128 = vmatpush1.bf16.msra.mxu0 0
      %2129 = vmatprep.subr.bf16.mxu0 0
      %2130 = vmatpush1.bf16.msra.mxu0 0
      %2131 = vmatprep.subr.bf16.mxu0 0
      %2132 = vmatpush1.bf16.msra.mxu0 0
      %2133 = vmatprep.mubr.bf16.mxu0 0
      %2134 = vmatmul.mubr.bf16.gmra.mrb[0].mxu0 %v2036
      %v2135 = vpop.f32.mrb[0].mxu0
      %v2136 = vadd.f32 0.0, %v2135
      %v2137 = vpop.f32.mrb[0].mxu0
      %v2138 = vpop.f32.mrb[0].mxu0
      %v2139 = vpop.f32.mrb[0].mxu0
      %2140 = vdwg.mxu0
      %v2141 = vpack.c.bf16 %v2136, %v2136
      %v2142 = vld [vmem:[%s16] sm:$0xf]
      %v2143 = vld [vmem:[%s17] sm:$0x1]
      %v2145 = vsel %vm1659, %v2141, 0
      %v2148 = vsel %vm1663, %v2142, 0
      %2150 = vmatprep.subr.bf16.mxu0 0
      %2151 = vmatpush1.bf16.msra.mxu0 %v2148
      %2152 = vmatprep.subr.bf16.mxu0 0
      %2153 = vmatpush1.bf16.msra.mxu0 0
      %2154 = vmatprep.subr.bf16.mxu0 0
      %2155 = vmatpush1.bf16.msra.mxu0 0
      %2156 = vmatprep.subr.bf16.mxu0 0
      %2157 = vmatpush1.bf16.msra.mxu0 0
      %2158 = vmatprep.subr.bf16.mxu0 0
      %2159 = vmatpush1.bf16.msra.mxu0 0
      %2160 = vmatprep.subr.bf16.mxu0 0
      %2161 = vmatpush1.bf16.msra.mxu0 0
      %2162 = vmatprep.subr.bf16.mxu0 0
      %2163 = vmatpush1.bf16.msra.mxu0 0
      %2164 = vmatprep.subr.bf16.mxu0 0
      %2165 = vmatpush1.bf16.msra.mxu0 0
      %2166 = vmatprep.subr.bf16.mxu0 0
      %2167 = vmatpush1.bf16.msra.mxu0 0
      %2168 = vmatprep.subr.bf16.mxu0 0
      %2169 = vmatpush1.bf16.msra.mxu0 0
      %2170 = vmatprep.subr.bf16.mxu0 0
      %2171 = vmatpush1.bf16.msra.mxu0 0
      %2172 = vmatprep.subr.bf16.mxu0 0
      %2173 = vmatpush1.bf16.msra.mxu0 0
      %2174 = vmatprep.subr.bf16.mxu0 0
      %2175 = vmatpush1.bf16.msra.mxu0 0
      %2176 = vmatprep.subr.bf16.mxu0 0
      %2177 = vmatpush1.bf16.msra.mxu0 0
      %2178 = vmatprep.subr.bf16.mxu0 0
      %2179 = vmatpush1.bf16.msra.mxu0 0
      %2180 = vmatprep.subr.bf16.mxu0 0
      %2181 = vmatpush1.bf16.msra.mxu0 0
      %2182 = vmatprep.mubr.bf16.mxu0 0
      %2183 = vmatmul.mubr.bf16.gmra.mrb[0].mxu0 %v2145
      %v2184 = vpop.f32.mrb[0].mxu0
      %v2185 = vadd.f32 %v2143, %v2184
      %v2186 = vpop.f32.mrb[0].mxu0
      %v2187 = vpop.f32.mrb[0].mxu0
      %v2188 = vpop.f32.mrb[0].mxu0
      %2189 = vdwg.mxu0
      %v2190 = vmax.f32 %v2185, 0.0
      %v2191 = vpack.c.bf16 %v2190, %v2190
      %v2192 = vld [vmem:[%s18] sm:$0x3]
      %v2193 = vld [vmem:[%s19] sm:$0x1]
      %vm2194 = vcmask 31744
      %v2196 = vsel %vm2194, %v2191, 0
      %vm2198 = vcmask 1041408
      %v2200 = vsel %vm2198, %v2192, 0
      %2202 = vmatprep.subr.bf16.mxu0 0
      %2203 = vmatpush1.bf16.msra.mxu0 %v2200
      %2204 = vmatprep.subr.bf16.mxu0 0
      %2205 = vmatpush1.bf16.msra.mxu0 0
      %2206 = vmatprep.subr.bf16.mxu0 0
      %2207 = vmatpush1.bf16.msra.mxu0 0
      %2208 = vmatprep.subr.bf16.mxu0 0
      %2209 = vmatpush1.bf16.msra.mxu0 0
      %2210 = vmatprep.subr.bf16.mxu0 0
      %2211 = vmatpush1.bf16.msra.mxu0 0
      %2212 = vmatprep.subr.bf16.mxu0 0
      %2213 = vmatpush1.bf16.msra.mxu0 0
      %2214 = vmatprep.subr.bf16.mxu0 0
      %2215 = vmatpush1.bf16.msra.mxu0 0
      %2216 = vmatprep.subr.bf16.mxu0 0
      %2217 = vmatpush1.bf16.msra.mxu0 0
      %2218 = vmatprep.subr.bf16.mxu0 0
      %2219 = vmatpush1.bf16.msra.mxu0 0
      %2220 = vmatprep.subr.bf16.mxu0 0
      %2221 = vmatpush1.bf16.msra.mxu0 0
      %2222 = vmatprep.subr.bf16.mxu0 0
      %2223 = vmatpush1.bf16.msra.mxu0 0
      %2224 = vmatprep.subr.bf16.mxu0 0
      %2225 = vmatpush1.bf16.msra.mxu0 0
      %2226 = vmatprep.subr.bf16.mxu0 0
      %2227 = vmatpush1.bf16.msra.mxu0 0
      %2228 = vmatprep.subr.bf16.mxu0 0
      %2229 = vmatpush1.bf16.msra.mxu0 0
      %2230 = vmatprep.subr.bf16.mxu0 0
      %2231 = vmatpush1.bf16.msra.mxu0 0
      %2232 = vmatprep.subr.bf16.mxu0 0
      %2233 = vmatpush1.bf16.msra.mxu0 0
      %2234 = vmatprep.mubr.bf16.mxu0 0
      %2235 = vmatmul.mubr.bf16.gmra.mrb[0].mxu0 %v2196
      %v2236 = vpop.f32.mrb[0].mxu0
      %v2237 = vadd.f32 %v2193, %v2236
      %v2238 = vpop.f32.mrb[0].mxu0
      %v2239 = vpop.f32.mrb[0].mxu0
      %v2240 = vpop.f32.mrb[0].mxu0
      %2241 = vdwg.mxu0
      %v2242 = vsub.f32 0.0, %v2237
      %v2243 = vmul.f32 %v2242, 1.442695
      %v2244 = vpow.pop %v2243
      %v2245 = vadd.f32 %v2244, 1.0
      %v2246 = vrcp.pop %v2245
      %v2247 = vpack.c.bf16 %v2246, %v2246
      %v2248 = vld [vmem:[%s20] sm:$0xf]
      %v2250 = vsel %vm1659, %v2247, 0
      %v2253 = vsel %vm1663, %v2248, 0
      %2255 = vmatprep.subr.bf16.mxu0 0
      %2256 = vmatpush1.bf16.msra.mxu0 %v2253
      %2257 = vmatprep.subr.bf16.mxu0 0
      %2258 = vmatpush1.bf16.msra.mxu0 0
      %2259 = vmatprep.subr.bf16.mxu0 0
      %2260 = vmatpush1.bf16.msra.mxu0 0
      %2261 = vmatprep.subr.bf16.mxu0 0
      %2262 = vmatpush1.bf16.msra.mxu0 0
      %2263 = vmatprep.subr.bf16.mxu0 0
      %2264 = vmatpush1.bf16.msra.mxu0 0
      %2265 = vmatprep.subr.bf16.mxu0 0
      %2266 = vmatpush1.bf16.msra.mxu0 0
      %2267 = vmatprep.subr.bf16.mxu0 0
      %2268 = vmatpush1.bf16.msra.mxu0 0
      %2269 = vmatprep.subr.bf16.mxu0 0
      %2270 = vmatpush1.bf16.msra.mxu0 0
      %2271 = vmatprep.subr.bf16.mxu0 0
      %2272 = vmatpush1.bf16.msra.mxu0 0
      %2273 = vmatprep.subr.bf16.mxu0 0
      %2274 = vmatpush1.bf16.msra.mxu0 0
      %2275 = vmatprep.subr.bf16.mxu0 0
      %2276 = vmatpush1.bf16.msra.mxu0 0
      %2277 = vmatprep.subr.bf16.mxu0 0
      %2278 = vmatpush1.bf16.msra.mxu0 0
      %2279 = vmatprep.subr.bf16.mxu0 0
      %2280 = vmatpush1.bf16.msra.mxu0 0
      %2281 = vmatprep.subr.bf16.mxu0 0
      %2282 = vmatpush1.bf16.msra.mxu0 0
      %2283 = vmatprep.subr.bf16.mxu0 0
      %2284 = vmatpush1.bf16.msra.mxu0 0
      %2285 = vmatprep.subr.bf16.mxu0 0
      %2286 = vmatpush1.bf16.msra.mxu0 0
      %2287 = vmatprep.mubr.bf16.mxu0 0
      %2288 = vmatmul.mubr.bf16.gmra.mrb[0].mxu0 %v2250
      %v2289 = vpop.f32.mrb[0].mxu0
      %v2290 = vadd.f32 0.0, %v2289
      %v2291 = vpop.f32.mrb[0].mxu0
      %v2292 = vpop.f32.mrb[0].mxu0
      %v2293 = vpop.f32.mrb[0].mxu0
      %2294 = vdwg.mxu0
      %v2295 = vlaneseq
      %v2296 = vshrl.u32 %v2295, 7
      %v2297 = vsub.s32 0, %v2296
      %v2298 = vrot.slane %v2290, %v2297
      %v2299 = vmul.f32 %v2027, %v2298
      %v2300 = vmul.f32 %v2028, %v2298
      %2301 = vst [vmem:[%s688] sm:$0xff] %v2299
      %2302 = vst [vmem:[%s688 + $0x8] sm:$0xff] %v2300
      %s2303 = smul.u32 2, %s33
      %p2304 = scmp.lt.s32.totalorder %s2303, 3
      %s2305 = scalar_select %p2304, %s2303, 3
      %s2306 = smul.addr %s2305, 8
      %s2307 = scalar_lea.vmem %s22, %s2306
      // Predicated region
      $region109: #{forward.1} parent=107 // pred_check
        %p2308 = pneg %p518
      $region110: #{forward.1} parent=107 // pred_check_branch
        %2310 = sbr.rel (%p2308) target = $region112
      $region111: #{forward.1} parent=107 // pred_region
        %s2311 = smul.u32 2, %s33
      $region112: #{forward.1} parent=107 // pred_fallthru
        _
    $region108: #{forward.1} parent=5 // pred_fallthru
      _
    %p2312 = scmp.le.s32.totalorder 2, %s28
    // Predicated region
    $region113: #{forward.1} parent=5 // pred_check
      %p2313 = pneg %p2312
    $region114: #{forward.1} parent=5 // pred_check_branch
      %2315 = sbr.rel (%p2313) target = $region116
    $region115: #{forward.1} parent=5 // pred_region
      %s2316 = ssub.s32 %s28, 2
      // Predicated region
      $region117: #{forward.1} parent=115 // pred_check
        %p2317 = pneg %p524
      $region118: #{forward.1} parent=115 // pred_check_branch
        %2319 = sbr.rel (%p2317) target = $region120
      $region119: #{forward.1} parent=115 // pred_region
        %s2320 = smul.u32 2, %s34
        %p2321 = scmp.lt.s32.totalorder %s2320, 3
        %s2322 = scalar_select %p2321, %s2320, 3
        %s2323 = smul.addr %s2322, 8
        %s2324 = scalar_lea.vmem %s22, %s2323
      $region120: #{forward.1} parent=115 // pred_fallthru
        _
    $region116: #{forward.1} parent=5 // pred_fallthru
      _
  $region6: #{forward.1} parent=0 // loop_footer
    %s32 = sadd.s32 1, %s28
  $region7: #{forward.1} parent=0 // loop_footer_branch
    %27 = sbr.rel target = $region3
  $region8: #{forward.1} parent=0 // loop_exit
    _

</llo_original>
